<compile_context>
chip_gen: v7x
topology: tpu7x:2x2x1
jax: 0.10.0
libtpu: 0.0.40
codegen_flags: <defaults>
</compile_context>

<pallas_src>
import math
from functools import partial

import jax
import jax.numpy as jnp
from jax.experimental import pallas as pl
from jax.experimental.pallas import tpu as pltpu


def _round_up(v, m):
    return (v + m - 1) // m * m


# ---------------------------------------------------------------------------
# One SAGEConv layer, tiled: grid = (row tiles of A, reduction tiles over cols)
# ---------------------------------------------------------------------------
def _sage_layer_kernel(a_ref, xagg_ref, xself_ref, wl_ref, wr_ref, b_ref,
                       out_ref, acc_ref, *, apply_relu):
    k = pl.program_id(1)

    @pl.when(k == 0)
    def _init():
        acc_ref[...] = jnp.zeros_like(acc_ref)

    # Mean aggregation A @ X: bf16 x bf16 on the MXU, f32 accumulation.
    acc_ref[...] += jnp.dot(a_ref[...], xagg_ref[...],
                            preferred_element_type=jnp.float32)

    @pl.when(k == pl.num_programs(1) - 1)
    def _finalize():
        agg = acc_ref[...]                                   # [tm, c_in] f32
        x_self = xself_ref[...].astype(jnp.float32)          # [tm, c_in]
        h = (jnp.dot(agg, wl_ref[...], preferred_element_type=jnp.float32)
             + jnp.dot(x_self, wr_ref[...], preferred_element_type=jnp.float32)
             + b_ref[...])
        if apply_relu:
            h = jnp.maximum(h, 0.0)
        out_ref[...] = h.astype(out_ref.dtype)


def _sage_conv(adj, x, wl, wr, b, *, apply_relu, out_dtype, tm, tk):
    """adj: [Np, Np] bf16, x: [Np, c_in] bf16, wl/wr: [c_in, c_out] f32, b: [1, c_out] f32."""
    n_pad = adj.shape[0]
    c_in = x.shape[1]
    c_out = wl.shape[1]
    grid = (n_pad // tm, n_pad // tk)

    kernel = partial(_sage_layer_kernel, apply_relu=apply_relu)
    return pl.pallas_call(
        kernel,
        out_shape=jax.ShapeDtypeStruct((n_pad, c_out), out_dtype),
        grid_spec=pltpu.PrefetchScalarGridSpec(
            num_scalar_prefetch=0,
            grid=grid,
            in_specs=[
                pl.BlockSpec((tm, tk), lambda i, k: (i, k)),       # A tile (streamed)
                pl.BlockSpec((tk, c_in), lambda i, k: (k, 0)),     # X rows for aggregation
                pl.BlockSpec((tm, c_in), lambda i, k: (i, 0)),     # X rows for self term (resident over k)
                pl.BlockSpec((c_in, c_out), lambda i, k: (0, 0)),  # Wl  (resident)
                pl.BlockSpec((c_in, c_out), lambda i, k: (0, 0)),  # Wr  (resident)
                pl.BlockSpec((1, c_out), lambda i, k: (0, 0)),     # bias (resident)
            ],
            out_specs=pl.BlockSpec((tm, c_out), lambda i, k: (i, 0)),
            scratch_shapes=[pltpu.VMEM((tm, c_in), jnp.float32)],  # agg accumulator
        ),
        compiler_params=pltpu.CompilerParams(
            dimension_semantics=("parallel", "arbitrary"),  # rows across TCs, k is a reduction
            vmem_limit_bytes=32 * 1024 * 1024,              # fits v7x (64 MiB phys) with headroom
        ),
    )(adj, x, x, wl, wr, b)


# ---------------------------------------------------------------------------
# Glue: dense row-normalized adjacency + padding + two layer calls
# ---------------------------------------------------------------------------
def _dense_mean_adjacency(edge_index, num_nodes, n_pad=None):
    n = num_nodes if n_pad is None else n_pad
    src, dst = edge_index[0], edge_index[1]
    counts = jnp.zeros((n, n), jnp.float32).at[dst, src].add(1.0)
    deg = counts.sum(axis=1, keepdims=True)
    return counts / jnp.maximum(deg, 1.0)


def graphsage_link_predictor(x, edge_index, params, *, tm=256, tk=512):
    """x: [N, C_in] f32, edge_index: [2, E] int32. Tiles must be 128-aligned
    (defaults sized for v6e/v7x; pass smaller 128-multiples on v5e)."""
    N, c_in = x.shape
    c_out = params["wl1"].shape[1]

    # ---- tile geometry: 128-aligned (MXU / lane friendly), clamp to problem ----
    tm = max(128, 128 * (tm // 128))
    tk = max(128, 128 * (tk // 128))
    cap = _round_up(N, 128)
    tm, tk = min(tm, cap), min(tk, cap)
    n_pad = _round_up(N, math.lcm(tm, tk))

    c_in_pad = _round_up(c_in, 128)
    c_out_pad = _round_up(c_out, 128)

    # Dense row-normalized adjacency in bf16 (values in [0,1]); padded nodes
    # have zero rows/cols so they never contaminate real outputs.
    adj = _dense_mean_adjacency(edge_index, N, n_pad).astype(jnp.bfloat16)

    pad2 = lambda a, r, c: jnp.pad(a, ((0, r - a.shape[0]), (0, c - a.shape[1])))
    x_p = pad2(x, n_pad, c_in_pad).astype(jnp.bfloat16)
    wl1 = pad2(params["wl1"], c_in_pad, c_out_pad)
    wr1 = pad2(params["wr1"], c_in_pad, c_out_pad)
    b1 = pad2(params["b1"], 1, c_out_pad)
    wl2 = pad2(params["wl2"], c_out_pad, c_out_pad)
    wr2 = pad2(params["wr2"], c_out_pad, c_out_pad)
    b2 = pad2(params["b2"], 1, c_out_pad)

    h1 = _sage_conv(adj, x_p, wl1, wr1, b1,
                    apply_relu=True, out_dtype=jnp.bfloat16, tm=tm, tk=tk)
    out = _sage_conv(adj, h1, wl2, wr2, b2,
                     apply_relu=False, out_dtype=jnp.float32, tm=tm, tk=tk)
    return out[:N, :c_out]


def init_params(key, in_channels, out_channels, use_both):
    if use_both:
        in_channels = in_channels * 2
    ks = jax.random.split(key, 6)
    s1 = 1.0 / jnp.sqrt(jnp.float32(in_channels))
    s2 = 1.0 / jnp.sqrt(jnp.float32(out_channels))
    # Stored as [in, out] (PyTorch Linear weight transposed).
    return {
        "wl1": jax.random.normal(ks[0], (in_channels, out_channels), jnp.float32) * s1,
        "wr1": jax.random.normal(ks[1], (in_channels, out_channels), jnp.float32) * s1,
        "b1":  jax.random.normal(ks[2], (1, out_channels), jnp.float32) * 0.01,
        "wl2": jax.random.normal(ks[3], (out_channels, out_channels), jnp.float32) * s2,
        "wr2": jax.random.normal(ks[4], (out_channels, out_channels), jnp.float32) * s2,
        "b2":  jax.random.normal(ks[5], (1, out_channels), jnp.float32) * 0.01,
    }


# ---------------------------------------------------------------------------
# References
# ---------------------------------------------------------------------------
def _reference_f32(x, edge_index, params):
    N = x.shape[0]
    adj = _dense_mean_adjacency(edge_index, N)
    h1 = jnp.maximum(adj @ x @ params["wl1"] + x @ params["wr1"] + params["b1"], 0.0)
    return adj @ h1 @ params["wl2"] + h1 @ params["wr2"] + params["b2"]


def _reference_bf16(x, edge_index, params):
    # Same math as the kernel, including the bf16 casts of A / activations.
    N = x.shape[0]
    adj = _dense_mean_adjacency(edge_index, N).astype(jnp.bfloat16)
    xb = x.astype(jnp.bfloat16)
    agg1 = jnp.dot(adj, xb, preferred_element_type=jnp.float32)
    h1 = jnp.maximum(agg1 @ params["wl1"] + xb.astype(jnp.float32) @ params["wr1"]
                     + params["b1"], 0.0)
    h1b = h1.astype(jnp.bfloat16)
    agg2 = jnp.dot(adj, h1b, preferred_element_type=jnp.float32)
    return agg2 @ params["wl2"] + h1b.astype(jnp.float32) @ params["wr2"] + params["b2"]


if __name__ == "__main__":
    key = jax.random.PRNGKey(0)
    k_feat, k_edge, k_param = jax.random.split(key, 3)

    N = 200              # nodes
    in_channels = 4
    out_channels = 32
    use_both = True      # -> effective input feature dim = 8
    E = 800              # edges

    feat_dim = in_channels * 2 if use_both else in_channels
    x = jax.random.normal(k_feat, (N, feat_dim), jnp.float32)
    edge_index = jax.random.randint(k_edge, (2, E), 0, N, jnp.int32)
    params = init_params(k_param, in_channels, out_channels, use_both)

    # tm=tk=128 -> padded N=256, grid=(2,2): exercises the parallel row axis
    # and the k-accumulation axis even at this small size.
    fwd = jax.jit(partial(graphsage_link_predictor, tm=128, tk=128))
    out = jax.block_until_ready(fwd(x, edge_index, params))

    assert out.shape == (N, out_channels)
    ref_bf16 = _reference_bf16(x, edge_index, params)
    ref_f32 = _reference_f32(x, edge_index, params)
    assert jnp.allclose(out, ref_bf16, atol=2e-2, rtol=2e-2), "mismatch vs bf16-emulated reference"
    assert jnp.allclose(out, ref_f32, atol=1e-1, rtol=1e-1), "mismatch vs f32 reference"

    print("KERNEL_OK")
</pallas_src>

<mosaic_0001>
module attributes {stable_mosaic.version = 11 : i64} {
  func.func private @main(%arg0: i32) attributes {dimension_semantics = [#tpu.dimension_semantics<core_parallel>], iteration_bounds = array<i64: 2>, tpu.core_type = #tpu.core_type<sc_scalar_subcore>, window_params = []} {
    return
  }
}

module attributes {stable_mosaic.version = 11 : i64} {
  func.func private @main(%arg0: i32) attributes {dimension_semantics = [#tpu.dimension_semantics<core_parallel>], iteration_bounds = array<i64: 2>, tpu.core_type = #tpu.core_type<sc_scalar_subcore>, window_params = []} {
    return
  }
}

module attributes {stable_mosaic.version = 11 : i64} {
  func.func @_sage_layer_kernel(%arg0: i32, %arg1: i32, %arg2: memref<128x128xbf16, #tpu.memory_space<vmem>>, %arg3: memref<128x128xbf16, #tpu.memory_space<vmem>>, %arg4: memref<128x128xbf16, #tpu.memory_space<vmem>>, %arg5: memref<128x128xf32, #tpu.memory_space<vmem>>, %arg6: memref<128x128xf32, #tpu.memory_space<vmem>>, %arg7: memref<1x128xf32, #tpu.memory_space<vmem>>, %arg8: memref<128x128xf32, #tpu.memory_space<vmem>>, %arg9: memref<128x128xf32, #tpu.memory_space<vmem>>) attributes {dimension_semantics = [#tpu.dimension_semantics<parallel>, #tpu.dimension_semantics<arbitrary>], iteration_bounds = array<i64: 2, 2>, scalar_prefetch = 0 : i64, scratch_operands = 1 : i64, tpu.core_type = #tpu.core_type<tc>, window_params = [{transform_indices = @transform_0, window_bounds = array<i64: 128, 128>}, {transform_indices = @transform_1, window_bounds = array<i64: 128, 128>}, {transform_indices = @transform_2, window_bounds = array<i64: 128, 128>}, {pipeline_mode = #tpu.pipeline_mode<synchronous>, transform_indices = @transform_3, window_bounds = array<i64: 128, 128>}, {pipeline_mode = #tpu.pipeline_mode<synchronous>, transform_indices = @transform_4, window_bounds = array<i64: 128, 128>}, {pipeline_mode = #tpu.pipeline_mode<synchronous>, transform_indices = @transform_5, window_bounds = array<i64: 1, 128>}, {transform_indices = @transform_6, window_bounds = array<i64: 128, 128>}]} {
    %c0_i32 = arith.constant 0 : i32
    %0 = arith.cmpi eq, %arg1, %c0_i32 : i32
    %1 = arith.extui %0 : i1 to i32
    %c0_i32_0 = arith.constant 0 : i32
    %2 = arith.cmpi ne, %1, %c0_i32_0 : i32
    scf.if %2 {
      %cst_9 = arith.constant 0.000000e+00 : f32
      %12 = vector.broadcast %cst_9 : f32 to vector<128x128xf32>
      %c0_10 = arith.constant 0 : index
      %c0_11 = arith.constant 0 : index
      %13 = vector.load %arg9[%c0_10, %c0_11] : memref<128x128xf32, #tpu.memory_space<vmem>>, vector<128x128xf32>
      tpu.vector_store %arg9[%c0_10, %c0_11], %12 {strides = array<i32>} : memref<128x128xf32, #tpu.memory_space<vmem>>, vector<128x128xf32>,
    } else {
    }
    %c0 = arith.constant 0 : index
    %c0_1 = arith.constant 0 : index
    %3 = vector.load %arg9[%c0, %c0_1] : memref<128x128xf32, #tpu.memory_space<vmem>>, vector<128x128xf32>
    %c0_2 = arith.constant 0 : index
    %c0_3 = arith.constant 0 : index
    %4 = vector.load %arg2[%c0_2, %c0_3] : memref<128x128xbf16, #tpu.memory_space<vmem>>, vector<128x128xbf16>
    %c0_4 = arith.constant 0 : index
    %c0_5 = arith.constant 0 : index
    %5 = vector.load %arg3[%c0_4, %c0_5] : memref<128x128xbf16, #tpu.memory_space<vmem>>, vector<128x128xbf16>
    %cst = arith.constant dense<0.000000e+00> : vector<128x128xf32>
    %6 = tpu.matmul %4, %5, %cst {dimension_numbers = #tpu.dot_dimension_numbers<[1], [0], [0], [1], [0, 0, 1, 1], [], []>} : vector<128x128xbf16>, vector<128x128xbf16>, vector<128x128xf32> -> vector<128x128xf32>
    %7 = arith.addf %3, %6 : vector<128x128xf32>
    %c0_6 = arith.constant 0 : index
    %c0_7 = arith.constant 0 : index
    %8 = vector.load %arg9[%c0_6, %c0_7] : memref<128x128xf32, #tpu.memory_space<vmem>>, vector<128x128xf32>
    tpu.vector_store %arg9[%c0_6, %c0_7], %7 {strides = array<i32>} : memref<128x128xf32, #tpu.memory_space<vmem>>, vector<128x128xf32>,
    %c1_i32 = arith.constant 1 : i32
    %9 = arith.cmpi eq, %arg1, %c1_i32 : i32
    %10 = arith.extui %9 : i1 to i32
    %c0_i32_8 = arith.constant 0 : i32
    %11 = arith.cmpi ne, %10, %c0_i32_8 : i32
    scf.if %11 {
      %c0_9 = arith.constant 0 : index
      %c0_10 = arith.constant 0 : index
      %12 = vector.load %arg9[%c0_9, %c0_10] : memref<128x128xf32, #tpu.memory_space<vmem>>, vector<128x128xf32>
      %c0_11 = arith.constant 0 : index
      %c0_12 = arith.constant 0 : index
      %13 = vector.load %arg4[%c0_11, %c0_12] : memref<128x128xbf16, #tpu.memory_space<vmem>>, vector<128x128xbf16>
      %14 = arith.extf %13 : vector<128x128xbf16> to vector<128x128xf32>
      %c0_13 = arith.constant 0 : index
      %c0_14 = arith.constant 0 : index
      %15 = vector.load %arg5[%c0_13, %c0_14] : memref<128x128xf32, #tpu.memory_space<vmem>>, vector<128x128xf32>
      %cst_15 = arith.constant dense<0.000000e+00> : vector<128x128xf32>
      %16 = tpu.matmul %12, %15, %cst_15 {dimension_numbers = #tpu.dot_dimension_numbers<[1], [0], [0], [1], [0, 0, 1, 1], [], []>} : vector<128x128xf32>, vector<128x128xf32>, vector<128x128xf32> -> vector<128x128xf32>
      %c0_16 = arith.constant 0 : index
      %c0_17 = arith.constant 0 : index
      %17 = vector.load %arg6[%c0_16, %c0_17] : memref<128x128xf32, #tpu.memory_space<vmem>>, vector<128x128xf32>
      %cst_18 = arith.constant dense<0.000000e+00> : vector<128x128xf32>
      %18 = tpu.matmul %14, %17, %cst_18 {dimension_numbers = #tpu.dot_dimension_numbers<[1], [0], [0], [1], [0, 0, 1, 1], [], []>} : vector<128x128xf32>, vector<128x128xf32>, vector<128x128xf32> -> vector<128x128xf32>
      %19 = arith.addf %16, %18 : vector<128x128xf32>
      %c0_19 = arith.constant 0 : index
      %c0_20 = arith.constant 0 : index
      %20 = vector.load %arg7[%c0_19, %c0_20] : memref<1x128xf32, #tpu.memory_space<vmem>>, vector<1x128xf32>
      %21 = vector.broadcast %20 : vector<1x128xf32> to vector<128x128xf32>
      %22 = arith.addf %19, %21 : vector<128x128xf32>
      %c0_21 = arith.constant 0 : index
      %c0_22 = arith.constant 0 : index
      %23 = vector.load %arg8[%c0_21, %c0_22] : memref<128x128xf32, #tpu.memory_space<vmem>>, vector<128x128xf32>
      tpu.vector_store %arg8[%c0_21, %c0_22], %22 {strides = array<i32>} : memref<128x128xf32, #tpu.memory_space<vmem>>, vector<128x128xf32>,
    } else {
    }
    return
  }
  func.func @transform_0(%arg0: i32, %arg1: i32) -> (i32, i32) {
    %c0_i32 = arith.constant 0 : i32
    return %arg0, %arg1 : i32, i32
  }
  func.func @transform_1(%arg0: i32, %arg1: i32) -> (i32, i32) {
    %c0_i32 = arith.constant 0 : i32
    %c0_i32_0 = arith.constant 0 : i32
    return %arg1, %c0_i32 : i32, i32
  }
  func.func @transform_2(%arg0: i32, %arg1: i32) -> (i32, i32) {
    %c0_i32 = arith.constant 0 : i32
    %c0_i32_0 = arith.constant 0 : i32
    return %arg0, %c0_i32 : i32, i32
  }
  func.func @transform_3(%arg0: i32, %arg1: i32) -> (i32, i32) {
    %c0_i32 = arith.constant 0 : i32
    %c0_i32_0 = arith.constant 0 : i32
    %c0_i32_1 = arith.constant 0 : i32
    return %c0_i32, %c0_i32_0 : i32, i32
  }
  func.func @transform_4(%arg0: i32, %arg1: i32) -> (i32, i32) {
    %c0_i32 = arith.constant 0 : i32
    %c0_i32_0 = arith.constant 0 : i32
    %c0_i32_1 = arith.constant 0 : i32
    return %c0_i32, %c0_i32_0 : i32, i32
  }
  func.func @transform_5(%arg0: i32, %arg1: i32) -> (i32, i32) {
    %c0_i32 = arith.constant 0 : i32
    %c0_i32_0 = arith.constant 0 : i32
    %c0_i32_1 = arith.constant 0 : i32
    return %c0_i32, %c0_i32_0 : i32, i32
  }
  func.func @transform_6(%arg0: i32, %arg1: i32) -> (i32, i32) {
    %c0_i32 = arith.constant 0 : i32
    %c0_i32_0 = arith.constant 0 : i32
    return %arg0, %c0_i32 : i32, i32
  }
}

module attributes {stable_mosaic.version = 11 : i64} {
  func.func @_sage_layer_kernel(%arg0: i32, %arg1: i32, %arg2: memref<128x128xbf16, #tpu.memory_space<vmem>>, %arg3: memref<128x128xbf16, #tpu.memory_space<vmem>>, %arg4: memref<128x128xbf16, #tpu.memory_space<vmem>>, %arg5: memref<128x128xf32, #tpu.memory_space<vmem>>, %arg6: memref<128x128xf32, #tpu.memory_space<vmem>>, %arg7: memref<1x128xf32, #tpu.memory_space<vmem>>, %arg8: memref<128x128xbf16, #tpu.memory_space<vmem>>, %arg9: memref<128x128xf32, #tpu.memory_space<vmem>>) attributes {dimension_semantics = [#tpu.dimension_semantics<parallel>, #tpu.dimension_semantics<arbitrary>], iteration_bounds = array<i64: 2, 2>, scalar_prefetch = 0 : i64, scratch_operands = 1 : i64, tpu.core_type = #tpu.core_type<tc>, window_params = [{transform_indices = @transform_0, window_bounds = array<i64: 128, 128>}, {transform_indices = @transform_1, window_bounds = array<i64: 128, 128>}, {transform_indices = @transform_2, window_bounds = array<i64: 128, 128>}, {pipeline_mode = #tpu.pipeline_mode<synchronous>, transform_indices = @transform_3, window_bounds = array<i64: 128, 128>}, {pipeline_mode = #tpu.pipeline_mode<synchronous>, transform_indices = @transform_4, window_bounds = array<i64: 128, 128>}, {pipeline_mode = #tpu.pipeline_mode<synchronous>, transform_indices = @transform_5, window_bounds = array<i64: 1, 128>}, {transform_indices = @transform_6, window_bounds = array<i64: 128, 128>}]} {
    %c0_i32 = arith.constant 0 : i32
    %0 = arith.cmpi eq, %arg1, %c0_i32 : i32
    %1 = arith.extui %0 : i1 to i32
    %c0_i32_0 = arith.constant 0 : i32
    %2 = arith.cmpi ne, %1, %c0_i32_0 : i32
    scf.if %2 {
      %cst_9 = arith.constant 0.000000e+00 : f32
      %12 = vector.broadcast %cst_9 : f32 to vector<128x128xf32>
      %c0_10 = arith.constant 0 : index
      %c0_11 = arith.constant 0 : index
      %13 = vector.load %arg9[%c0_10, %c0_11] : memref<128x128xf32, #tpu.memory_space<vmem>>, vector<128x128xf32>
      tpu.vector_store %arg9[%c0_10, %c0_11], %12 {strides = array<i32>} : memref<128x128xf32, #tpu.memory_space<vmem>>, vector<128x128xf32>,
    } else {
    }
    %c0 = arith.constant 0 : index
    %c0_1 = arith.constant 0 : index
    %3 = vector.load %arg9[%c0, %c0_1] : memref<128x128xf32, #tpu.memory_space<vmem>>, vector<128x128xf32>
    %c0_2 = arith.constant 0 : index
    %c0_3 = arith.constant 0 : index
    %4 = vector.load %arg2[%c0_2, %c0_3] : memref<128x128xbf16, #tpu.memory_space<vmem>>, vector<128x128xbf16>
    %c0_4 = arith.constant 0 : index
    %c0_5 = arith.constant 0 : index
    %5 = vector.load %arg3[%c0_4, %c0_5] : memref<128x128xbf16, #tpu.memory_space<vmem>>, vector<128x128xbf16>
    %cst = arith.constant dense<0.000000e+00> : vector<128x128xf32>
    %6 = tpu.matmul %4, %5, %cst {dimension_numbers = #tpu.dot_dimension_numbers<[1], [0], [0], [1], [0, 0, 1, 1], [], []>} : vector<128x128xbf16>, vector<128x128xbf16>, vector<128x128xf32> -> vector<128x128xf32>
    %7 = arith.addf %3, %6 : vector<128x128xf32>
    %c0_6 = arith.constant 0 : index
    %c0_7 = arith.constant 0 : index
    %8 = vector.load %arg9[%c0_6, %c0_7] : memref<128x128xf32, #tpu.memory_space<vmem>>, vector<128x128xf32>
    tpu.vector_store %arg9[%c0_6, %c0_7], %7 {strides = array<i32>} : memref<128x128xf32, #tpu.memory_space<vmem>>, vector<128x128xf32>,
    %c1_i32 = arith.constant 1 : i32
    %9 = arith.cmpi eq, %arg1, %c1_i32 : i32
    %10 = arith.extui %9 : i1 to i32
    %c0_i32_8 = arith.constant 0 : i32
    %11 = arith.cmpi ne, %10, %c0_i32_8 : i32
    scf.if %11 {
      %c0_9 = arith.constant 0 : index
      %c0_10 = arith.constant 0 : index
      %12 = vector.load %arg9[%c0_9, %c0_10] : memref<128x128xf32, #tpu.memory_space<vmem>>, vector<128x128xf32>
      %c0_11 = arith.constant 0 : index
      %c0_12 = arith.constant 0 : index
      %13 = vector.load %arg4[%c0_11, %c0_12] : memref<128x128xbf16, #tpu.memory_space<vmem>>, vector<128x128xbf16>
      %14 = arith.extf %13 : vector<128x128xbf16> to vector<128x128xf32>
      %c0_13 = arith.constant 0 : index
      %c0_14 = arith.constant 0 : index
      %15 = vector.load %arg5[%c0_13, %c0_14] : memref<128x128xf32, #tpu.memory_space<vmem>>, vector<128x128xf32>
      %cst_15 = arith.constant dense<0.000000e+00> : vector<128x128xf32>
      %16 = tpu.matmul %12, %15, %cst_15 {dimension_numbers = #tpu.dot_dimension_numbers<[1], [0], [0], [1], [0, 0, 1, 1], [], []>} : vector<128x128xf32>, vector<128x128xf32>, vector<128x128xf32> -> vector<128x128xf32>
      %c0_16 = arith.constant 0 : index
      %c0_17 = arith.constant 0 : index
      %17 = vector.load %arg6[%c0_16, %c0_17] : memref<128x128xf32, #tpu.memory_space<vmem>>, vector<128x128xf32>
      %cst_18 = arith.constant dense<0.000000e+00> : vector<128x128xf32>
      %18 = tpu.matmul %14, %17, %cst_18 {dimension_numbers = #tpu.dot_dimension_numbers<[1], [0], [0], [1], [0, 0, 1, 1], [], []>} : vector<128x128xf32>, vector<128x128xf32>, vector<128x128xf32> -> vector<128x128xf32>
      %19 = arith.addf %16, %18 : vector<128x128xf32>
      %c0_19 = arith.constant 0 : index
      %c0_20 = arith.constant 0 : index
      %20 = vector.load %arg7[%c0_19, %c0_20] : memref<1x128xf32, #tpu.memory_space<vmem>>, vector<1x128xf32>
      %21 = vector.broadcast %20 : vector<1x128xf32> to vector<128x128xf32>
      %22 = arith.addf %19, %21 : vector<128x128xf32>
      %cst_21 = arith.constant 0.000000e+00 : f32
      %23 = vector.broadcast %cst_21 : f32 to vector<128x128xf32>
      %24 = arith.maximumf %22, %23 : vector<128x128xf32>
      %25 = arith.truncf %24 : vector<128x128xf32> to vector<128x128xbf16>
      %c0_22 = arith.constant 0 : index
      %c0_23 = arith.constant 0 : index
      %26 = vector.load %arg8[%c0_22, %c0_23] : memref<128x128xbf16, #tpu.memory_space<vmem>>, vector<128x128xbf16>
      tpu.vector_store %arg8[%c0_22, %c0_23], %25 {strides = array<i32>} : memref<128x128xbf16, #tpu.memory_space<vmem>>, vector<128x128xbf16>,
    } else {
    }
    return
  }
  func.func @transform_0(%arg0: i32, %arg1: i32) -> (i32, i32) {
    %c0_i32 = arith.constant 0 : i32
    return %arg0, %arg1 : i32, i32
  }
  func.func @transform_1(%arg0: i32, %arg1: i32) -> (i32, i32) {
    %c0_i32 = arith.constant 0 : i32
    %c0_i32_0 = arith.constant 0 : i32
    return %arg1, %c0_i32 : i32, i32
  }
  func.func @transform_2(%arg0: i32, %arg1: i32) -> (i32, i32) {
    %c0_i32 = arith.constant 0 : i32
    %c0_i32_0 = arith.constant 0 : i32
    return %arg0, %c0_i32 : i32, i32
  }
  func.func @transform_3(%arg0: i32, %arg1: i32) -> (i32, i32) {
    %c0_i32 = arith.constant 0 : i32
    %c0_i32_0 = arith.constant 0 : i32
    %c0_i32_1 = arith.constant 0 : i32
    return %c0_i32, %c0_i32_0 : i32, i32
  }
  func.func @transform_4(%arg0: i32, %arg1: i32) -> (i32, i32) {
    %c0_i32 = arith.constant 0 : i32
    %c0_i32_0 = arith.constant 0 : i32
    %c0_i32_1 = arith.constant 0 : i32
    return %c0_i32, %c0_i32_0 : i32, i32
  }
  func.func @transform_5(%arg0: i32, %arg1: i32) -> (i32, i32) {
    %c0_i32 = arith.constant 0 : i32
    %c0_i32_0 = arith.constant 0 : i32
    %c0_i32_1 = arith.constant 0 : i32
    return %c0_i32, %c0_i32_0 : i32, i32
  }
  func.func @transform_6(%arg0: i32, %arg1: i32) -> (i32, i32) {
    %c0_i32 = arith.constant 0 : i32
    %c0_i32_0 = arith.constant 0 : i32
    return %arg0, %c0_i32 : i32, i32
  }
}

</mosaic_0001>

<llo_original>
// kernel: graphsage_link_predictor.3
$region0: #{graphsage_link_predictor.3}
  #allocation0 [shape = 'u32[]', space=smem, size = 0x4, offset = 0x4, fixed_abs, tag = 'smem constant byte address 0x4 - core index']
  #allocation1 [shape = 'u32[144,128]{1,0:T(1,128)}', space=vmem, size = 0x12000, scoped, tag = 'internal scratch']
  #allocation2 [shape = 'f32[128,128]{1,0:T(8,128)}', space=vmem, size = 0x10000, scoped, tag = 'scratch operand']
  %s0 = inlined_call_operand.vmem [shape: bf16[256,256], index: 0, kind: input, shape index: {}]
  %s1 = inlined_call_operand.vmem [shape: bf16[256,128], index: 1, kind: input, shape index: {}, may-alias: {1,2}]
  %s2 = inlined_call_operand.vmem [shape: bf16[256,128], index: 2, kind: input, shape index: {}, may-alias: {1,2}]
  %s3 = inlined_call_operand.vmem [shape: f32[128,128], index: 3, kind: input, shape index: {}]
  %s4 = inlined_call_operand.vmem [shape: f32[128,128], index: 4, kind: input, shape index: {}]
  %s5 = inlined_call_operand.vmem [shape: f32[1,128], index: 5, kind: input, shape index: {}]
  %s6 = inlined_call_operand.vmem [shape: f32[256,128], index: 6, kind: output, shape index: {}]
  %s7 = sld [smem:[#allocation0]]
  $region106: #{graphsage_link_predictor.3} parent=0
    _
  %s9 = ssub.s32 1, %s7
  %s10 = scalar_select 0, %s9, %s7
  $region1: #{graphsage_link_predictor.3} parent=0
    #allocation3 [shape = 'u8[65536]{0}', space=vmem, size = 0x10000, scoped, tag = 'input window, operand 0']
    loop: start=0, step=1, limit=6
    $region2: #{graphsage_link_predictor.3} parent=1 // loop_pre_header
      _
    $region3: #{graphsage_link_predictor.3} parent=1 // loop_header
      %s12 = sphi 0, %s16
      %p13 = scmp.ge.s32.totalorder %s12, 6
      %s19 = sphi 0, %s31
      %s20 = sphi 0, %s27
      %s21 = sphi 0, %s19
      %s22 = sphi 0, %s20
      %s23 = sphi 0, %s21
      %s24 = sphi 0, %s22
      %s36 = sphi 0, %s38
      %s39 = sphi 0, %s36
      %s40 = sphi 0, %s39
      %s56 = sphi 0, %s40
      %s62 = sphi 0, %s64
      %s65 = sphi 0, %s62
      %s66 = sphi 0, %s65
      %s82 = sphi 0, %s66
      %s88 = sphi 0, %s90
      %s91 = sphi 0, %s88
      %s92 = sphi 0, %s91
      %s108 = sphi 0, %s92
      %s112 = sphi 0, %s112
      %s114 = sphi 0, %s112
      %s115 = sphi 0, %s114
      %s129 = sphi 0, %s115
      %s133 = sphi 0, %s133
      %s135 = sphi 0, %s133
      %s136 = sphi 0, %s135
      %s150 = sphi 0, %s136
      %s154 = sphi 0, %s154
      %s156 = sphi 0, %s154
      %s157 = sphi 0, %s156
      %s171 = sphi 0, %s157
      %s177 = sphi 0, %s179
      %s180 = sphi 0, %s177
      %s181 = sphi 0, %s180
      %s197 = sphi 0, %s181
    $region4: #{graphsage_link_predictor.3} parent=1 // loop_header_branch
      %15 = sbr.rel (%p13) target = $region8
    $region5: #{graphsage_link_predictor.3} parent=1 // loop_body
      %s17 = ssub.s32 %s12, 1
      %s18 = ssub.s32 %s12, 2
      %s25 = sadd.s32 1, %s20
      %p26 = scmp.ge.s32.totalorder %s25, 2
      %s27 = scalar_select %p26, 0, %s25
      %s28 = sadd.s32 1, %s19
      %s29 = scalar_select %p26, %s28, %s19
      %p30 = scmp.ge.s32.totalorder %s29, 2
      %s31 = scalar_select %p30, 0, %s29
      %s32 = ssub.s32 %s19, %s31
      %s33 = ssub.s32 %s20, %s27
      %s34 = sor.u32 %s32, %s33
      %p35 = scmp.eq.s32.totalorder %s34, 0
      %s37 = sadd.s32 %s36, 1
      %s38 = scalar_select %p35, %s36, %s37
      %p41 = pneg %p35
      %p42 = scmp.eq.s32.totalorder %s12, 3
      %p43 = por %p41, %p42
      %p44 = scmp.ne.s32.totalorder %s36, %s39
      %p45 = scmp.eq.s32.totalorder %s12, 0
      %p46 = por %p44, %p45
      %p47 = scmp.ne.s32.totalorder %s36, %s39
      %p48 = scmp.eq.s32.totalorder %s17, 3
      %p49 = por %p47, %p48
      %p50 = scmp.ne.s32.totalorder %s39, %s40
      %p51 = scmp.eq.s32.totalorder %s17, 0
      %p52 = por %p50, %p51
      %p53 = scmp.ne.s32.totalorder %s39, %s40
      %p54 = scmp.eq.s32.totalorder %s18, 3
      %p55 = por %p53, %p54
      %p57 = scmp.ne.s32.totalorder %s40, %s56
      %p58 = scmp.eq.s32.totalorder %s18, 0
      %p59 = por %p57, %p58
      %s60 = ssub.s32 %s20, %s27
      %p61 = scmp.eq.s32.totalorder %s60, 0
      %s63 = sadd.s32 %s62, 1
      %s64 = scalar_select %p61, %s62, %s63
      %p67 = pneg %p61
      %p68 = scmp.eq.s32.totalorder %s12, 3
      %p69 = por %p67, %p68
      %p70 = scmp.ne.s32.totalorder %s62, %s65
      %p71 = scmp.eq.s32.totalorder %s12, 0
      %p72 = por %p70, %p71
      %p73 = scmp.ne.s32.totalorder %s62, %s65
      %p74 = scmp.eq.s32.totalorder %s17, 3
      %p75 = por %p73, %p74
      %p76 = scmp.ne.s32.totalorder %s65, %s66
      %p77 = scmp.eq.s32.totalorder %s17, 0
      %p78 = por %p76, %p77
      %p79 = scmp.ne.s32.totalorder %s65, %s66
      %p80 = scmp.eq.s32.totalorder %s18, 3
      %p81 = por %p79, %p80
      %p83 = scmp.ne.s32.totalorder %s66, %s82
      %p84 = scmp.eq.s32.totalorder %s18, 0
      %p85 = por %p83, %p84
      %s86 = ssub.s32 %s19, %s31
      %p87 = scmp.eq.s32.totalorder %s86, 0
      %s89 = sadd.s32 %s88, 1
      %s90 = scalar_select %p87, %s88, %s89
      %p93 = pneg %p87
      %p94 = scmp.eq.s32.totalorder %s12, 3
      %p95 = por %p93, %p94
      %p96 = scmp.ne.s32.totalorder %s88, %s91
      %p97 = scmp.eq.s32.totalorder %s12, 0
      %p98 = por %p96, %p97
      %p99 = scmp.ne.s32.totalorder %s88, %s91
      %p100 = scmp.eq.s32.totalorder %s17, 3
      %p101 = por %p99, %p100
      %p102 = scmp.ne.s32.totalorder %s91, %s92
      %p103 = scmp.eq.s32.totalorder %s17, 0
      %p104 = por %p102, %p103
      %p105 = scmp.ne.s32.totalorder %s91, %s92
      %p106 = scmp.eq.s32.totalorder %s18, 3
      %p107 = por %p105, %p106
      %p109 = scmp.ne.s32.totalorder %s92, %s108
      %p110 = scmp.eq.s32.totalorder %s18, 0
      %p111 = por %p109, %p110
      %s113 = sadd.s32 %s112, 1
      %p116 = scmp.eq.s32.totalorder %s12, 3
      %p117 = scmp.ne.s32.totalorder %s112, %s114
      %p118 = scmp.eq.s32.totalorder %s12, 0
      %p119 = por %p117, %p118
      %p120 = scmp.ne.s32.totalorder %s112, %s114
      %p121 = scmp.eq.s32.totalorder %s17, 3
      %p122 = por %p120, %p121
      %p123 = scmp.ne.s32.totalorder %s114, %s115
      %p124 = scmp.eq.s32.totalorder %s17, 0
      %p125 = por %p123, %p124
      %p126 = scmp.ne.s32.totalorder %s114, %s115
      %p127 = scmp.eq.s32.totalorder %s18, 3
      %p128 = por %p126, %p127
      %p130 = scmp.ne.s32.totalorder %s115, %s129
      %p131 = scmp.eq.s32.totalorder %s18, 0
      %p132 = por %p130, %p131
      %s134 = sadd.s32 %s133, 1
      %p137 = scmp.eq.s32.totalorder %s12, 3
      %p138 = scmp.ne.s32.totalorder %s133, %s135
      %p139 = scmp.eq.s32.totalorder %s12, 0
      %p140 = por %p138, %p139
      %p141 = scmp.ne.s32.totalorder %s133, %s135
      %p142 = scmp.eq.s32.totalorder %s17, 3
      %p143 = por %p141, %p142
      %p144 = scmp.ne.s32.totalorder %s135, %s136
      %p145 = scmp.eq.s32.totalorder %s17, 0
      %p146 = por %p144, %p145
      %p147 = scmp.ne.s32.totalorder %s135, %s136
      %p148 = scmp.eq.s32.totalorder %s18, 3
      %p149 = por %p147, %p148
      %p151 = scmp.ne.s32.totalorder %s136, %s150
      %p152 = scmp.eq.s32.totalorder %s18, 0
      %p153 = por %p151, %p152
      %s155 = sadd.s32 %s154, 1
      %p158 = scmp.eq.s32.totalorder %s12, 3
      %p159 = scmp.ne.s32.totalorder %s154, %s156
      %p160 = scmp.eq.s32.totalorder %s12, 0
      %p161 = por %p159, %p160
      %p162 = scmp.ne.s32.totalorder %s154, %s156
      %p163 = scmp.eq.s32.totalorder %s17, 3
      %p164 = por %p162, %p163
      %p165 = scmp.ne.s32.totalorder %s156, %s157
      %p166 = scmp.eq.s32.totalorder %s17, 0
      %p167 = por %p165, %p166
      %p168 = scmp.ne.s32.totalorder %s156, %s157
      %p169 = scmp.eq.s32.totalorder %s18, 3
      %p170 = por %p168, %p169
      %p172 = scmp.ne.s32.totalorder %s157, %s171
      %p173 = scmp.eq.s32.totalorder %s18, 0
      %p174 = por %p172, %p173
      %s175 = ssub.s32 %s19, %s31
      %p176 = scmp.eq.s32.totalorder %s175, 0
      %s178 = sadd.s32 %s177, 1
      %s179 = scalar_select %p176, %s177, %s178
      %p182 = pneg %p176
      %p183 = scmp.eq.s32.totalorder %s12, 3
      %p184 = por %p182, %p183
      %p185 = scmp.ne.s32.totalorder %s177, %s180
      %p186 = scmp.eq.s32.totalorder %s12, 0
      %p187 = por %p185, %p186
      %p188 = scmp.ne.s32.totalorder %s177, %s180
      %p189 = scmp.eq.s32.totalorder %s17, 3
      %p190 = por %p188, %p189
      %p191 = scmp.ne.s32.totalorder %s180, %s181
      %p192 = scmp.eq.s32.totalorder %s17, 0
      %p193 = por %p191, %p192
      %p194 = scmp.ne.s32.totalorder %s180, %s181
      %p195 = scmp.eq.s32.totalorder %s18, 3
      %p196 = por %p194, %p195
      %p198 = scmp.ne.s32.totalorder %s181, %s197
      %p199 = scmp.eq.s32.totalorder %s18, 0
      %p200 = por %p198, %p199
      %p201 = scmp.le.s32.totalorder 1, %s12
      %p202 = scmp.lt.s32.totalorder %s12, 5
      %p203 = pnand %p201, %p202
      %p204 = pneg %p203
      // Predicated region
      $region9: #{graphsage_link_predictor.3} parent=5 // pred_check
        _
      $region10: #{graphsage_link_predictor.3} parent=5 // pred_check_branch
        %206 = sbr.rel (%p203) target = $region12
      $region11: #{graphsage_link_predictor.3} parent=5 // pred_region
        %s207 = ssub.s32 %s12, 1
        // Predicated region
        $region13: #{graphsage_link_predictor.3} parent=11 // pred_check
          %p208 = pneg %p125
        $region14: #{graphsage_link_predictor.3} parent=11 // pred_check_branch
          %210 = sbr.rel (%p208) target = $region16
        $region15: #{graphsage_link_predictor.3} parent=11 // pred_region
          _
        $region16: #{graphsage_link_predictor.3} parent=11 // pred_fallthru
          _
        // Predicated region
        $region17: #{graphsage_link_predictor.3} parent=11 // pred_check
          %p211 = pneg %p146
        $region18: #{graphsage_link_predictor.3} parent=11 // pred_check_branch
          %213 = sbr.rel (%p211) target = $region20
        $region19: #{graphsage_link_predictor.3} parent=11 // pred_region
          _
        $region20: #{graphsage_link_predictor.3} parent=11 // pred_fallthru
          _
        // Predicated region
        $region21: #{graphsage_link_predictor.3} parent=11 // pred_check
          %p214 = pneg %p167
        $region22: #{graphsage_link_predictor.3} parent=11 // pred_check_branch
          %216 = sbr.rel (%p214) target = $region24
        $region23: #{graphsage_link_predictor.3} parent=11 // pred_region
          _
        $region24: #{graphsage_link_predictor.3} parent=11 // pred_fallthru
          _
      $region12: #{graphsage_link_predictor.3} parent=5 // pred_fallthru
        _
      %p217 = scmp.lt.s32.totalorder %s12, 4
      // Predicated region
      $region25: #{graphsage_link_predictor.3} parent=5 // pred_check
        %p218 = pneg %p217
      $region26: #{graphsage_link_predictor.3} parent=5 // pred_check_branch
        %220 = sbr.rel (%p218) target = $region28
      $region27: #{graphsage_link_predictor.3} parent=5 // pred_region
        // Predicated region
        $region29: #{graphsage_link_predictor.3} parent=27 // pred_check
          %p221 = pneg %p46
        $region30: #{graphsage_link_predictor.3} parent=27 // pred_check_branch
          %223 = sbr.rel (%p221) target = $region32
        $region31: #{graphsage_link_predictor.3} parent=27 // pred_region
          %s224 = sand.u32 %s36, 1
          %s225 = sand.u32 %s36, 1
          %s226 = smul.addr %s225, 64
          %s227 = scalar_lea.vmem [#allocation3], %s226
          %s228 = smul.u32 16, %s19
          %s229 = smul.addr %s228, 2
          %s230 = sadd.s32 %s20, %s229
          %s231 = smul.addr %s230, 4
          %s232 = scalar_lea.vmem %s0, %s231
          // Predicated region
          $region33: #{graphsage_link_predictor.3} parent=31 // pred_check
            _
          $region34: #{graphsage_link_predictor.3} parent=31 // pred_check_branch
            %234 = sbr.rel (0) target = $region36
          $region35: #{graphsage_link_predictor.3} parent=31 // pred_region
            // Predicated region
            $region37: #{graphsage_link_predictor.3} parent=35 // pred_check
              _
            $region38: #{graphsage_link_predictor.3} parent=35 // pred_check_branch
              %236 = sbr.rel target = $region40
            $region39: #{graphsage_link_predictor.3} parent=35 // pred_region
              // Predicated region
              $region52: #{graphsage_link_predictor.3} parent=39 // pred_check
                _
              $region53: #{graphsage_link_predictor.3} parent=39 // pred_check_branch
                %281 = sbr.rel (0) target = $region55
              $region54: #{graphsage_link_predictor.3} parent=39 // pred_region
                loop: start=0, step=1, limit=1
                $region56: #{graphsage_link_predictor.3} parent=54 // loop_pre_header
                  _
                $region57: #{graphsage_link_predictor.3} parent=54 // loop_header
                  %s283 = sphi 0, %s287
                  %p284 = scmp.ge.s32.totalorder %s283, 1
                  %s288 = sphi %s232, %s232
                  %s289 = sphi %s227, %s227
                $region58: #{graphsage_link_predictor.3} parent=54 // loop_header_branch
                  %286 = sbr.rel (%p284) target = $region62
                $region59: #{graphsage_link_predictor.3} parent=54 // loop_body
                  _
                $region60: #{graphsage_link_predictor.3} parent=54 // loop_footer
                  %s287 = sadd.s32 1, %s283
                $region61: #{graphsage_link_predictor.3} parent=54 // loop_footer_branch
                  %282 = sbr.rel target = $region57
                $region62: #{graphsage_link_predictor.3} parent=54 // loop_exit
                  _
                loop: start=0, step=1, limit=1
                $region63: #{graphsage_link_predictor.3} parent=54 // loop_pre_header
                  _
                $region64: #{graphsage_link_predictor.3} parent=54 // loop_header
                  %s292 = sphi 0, %s296
                  %p293 = scmp.ge.s32.totalorder %s292, 1
                  %s297 = sphi %s232, %s232
                  %s298 = sphi %s227, %s227
                $region65: #{graphsage_link_predictor.3} parent=54 // loop_header_branch
                  %295 = sbr.rel (%p293) target = $region69
                $region66: #{graphsage_link_predictor.3} parent=54 // loop_body
                  %v299 = vld [vmem:[%s297] sm:$0xf]
                  %300 = vst [vmem:[%s298] sm:$0xf] %v299
                  %v301 = vld [vmem:[%s297 + $0x8] sm:$0xf]
                  %302 = vst [vmem:[%s298 + $0x4] sm:$0xf] %v301
                  %v303 = vld [vmem:[%s297 + $0x10] sm:$0xf]
                  %304 = vst [vmem:[%s298 + $0x8] sm:$0xf] %v303
                  %v305 = vld [vmem:[%s297 + $0x18] sm:$0xf]
                  %306 = vst [vmem:[%s298 + $0xc] sm:$0xf] %v305
                  %v307 = vld [vmem:[%s297 + $0x20] sm:$0xf]
                  %308 = vst [vmem:[%s298 + $0x10] sm:$0xf] %v307
                  %v309 = vld [vmem:[%s297 + $0x28] sm:$0xf]
                  %310 = vst [vmem:[%s298 + $0x14] sm:$0xf] %v309
                  %v311 = vld [vmem:[%s297 + $0x30] sm:$0xf]
                  %312 = vst [vmem:[%s298 + $0x18] sm:$0xf] %v311
                  %v313 = vld [vmem:[%s297 + $0x38] sm:$0xf]
                  %314 = vst [vmem:[%s298 + $0x1c] sm:$0xf] %v313
                  %v315 = vld [vmem:[%s297 + $0x40] sm:$0xf]
                  %316 = vst [vmem:[%s298 + $0x20] sm:$0xf] %v315
                  %v317 = vld [vmem:[%s297 + $0x48] sm:$0xf]
                  %318 = vst [vmem:[%s298 + $0x24] sm:$0xf] %v317
                  %v319 = vld [vmem:[%s297 + $0x50] sm:$0xf]
                  %320 = vst [vmem:[%s298 + $0x28] sm:$0xf] %v319
                  %v321 = vld [vmem:[%s297 + $0x58] sm:$0xf]
                  %322 = vst [vmem:[%s298 + $0x2c] sm:$0xf] %v321
                  %v323 = vld [vmem:[%s297 + $0x60] sm:$0xf]
                  %324 = vst [vmem:[%s298 + $0x30] sm:$0xf] %v323
                  %v325 = vld [vmem:[%s297 + $0x68] sm:$0xf]
                  %326 = vst [vmem:[%s298 + $0x34] sm:$0xf] %v325
                  %v327 = vld [vmem:[%s297 + $0x70] sm:$0xf]
                  %328 = vst [vmem:[%s298 + $0x38] sm:$0xf] %v327
                  %v329 = vld [vmem:[%s297 + $0x78] sm:$0xf]
                  %330 = vst [vmem:[%s298 + $0x3c] sm:$0xf] %v329
                $region67: #{graphsage_link_predictor.3} parent=54 // loop_footer
                  %s296 = sadd.s32 1, %s292
                $region68: #{graphsage_link_predictor.3} parent=54 // loop_footer_branch
                  %291 = sbr.rel target = $region64
                $region69: #{graphsage_link_predictor.3} parent=54 // loop_exit
                  _
              $region55: #{graphsage_link_predictor.3} parent=39 // pred_fallthru
                _
            $region40: #{graphsage_link_predictor.3} parent=35 // pred_fallthru
              _
            // Predicated region
            $region41: #{graphsage_link_predictor.3} parent=35 // pred_check
              _
            $region42: #{graphsage_link_predictor.3} parent=35 // pred_check_branch
              %238 = sbr.rel (0) target = $region44
            $region43: #{graphsage_link_predictor.3} parent=35 // pred_region
              loop: start=0, step=1, limit=1
              $region45: #{graphsage_link_predictor.3} parent=43 // loop_pre_header
                _
              $region46: #{graphsage_link_predictor.3} parent=43 // loop_header
                %s241 = sphi 0, %s245
                %p242 = scmp.ge.s32.totalorder %s241, 1
                %s246 = sphi %s232, %s232
                %s247 = sphi %s227, %s227
              $region47: #{graphsage_link_predictor.3} parent=43 // loop_header_branch
                %244 = sbr.rel (%p242) target = $region51
              $region48: #{graphsage_link_predictor.3} parent=43 // loop_body
                %v248 = vld [vmem:[%s246] sm:$0xf]
                %249 = vst [vmem:[%s247] sm:$0xf] %v248
                %v250 = vld [vmem:[%s246 + $0x8] sm:$0xf]
                %251 = vst [vmem:[%s247 + $0x4] sm:$0xf] %v250
                %v252 = vld [vmem:[%s246 + $0x10] sm:$0xf]
                %253 = vst [vmem:[%s247 + $0x8] sm:$0xf] %v252
                %v254 = vld [vmem:[%s246 + $0x18] sm:$0xf]
                %255 = vst [vmem:[%s247 + $0xc] sm:$0xf] %v254
                %v256 = vld [vmem:[%s246 + $0x20] sm:$0xf]
                %257 = vst [vmem:[%s247 + $0x10] sm:$0xf] %v256
                %v258 = vld [vmem:[%s246 + $0x28] sm:$0xf]
                %259 = vst [vmem:[%s247 + $0x14] sm:$0xf] %v258
                %v260 = vld [vmem:[%s246 + $0x30] sm:$0xf]
                %261 = vst [vmem:[%s247 + $0x18] sm:$0xf] %v260
                %v262 = vld [vmem:[%s246 + $0x38] sm:$0xf]
                %263 = vst [vmem:[%s247 + $0x1c] sm:$0xf] %v262
                %v264 = vld [vmem:[%s246 + $0x40] sm:$0xf]
                %265 = vst [vmem:[%s247 + $0x20] sm:$0xf] %v264
                %v266 = vld [vmem:[%s246 + $0x48] sm:$0xf]
                %267 = vst [vmem:[%s247 + $0x24] sm:$0xf] %v266
                %v268 = vld [vmem:[%s246 + $0x50] sm:$0xf]
                %269 = vst [vmem:[%s247 + $0x28] sm:$0xf] %v268
                %v270 = vld [vmem:[%s246 + $0x58] sm:$0xf]
                %271 = vst [vmem:[%s247 + $0x2c] sm:$0xf] %v270
                %v272 = vld [vmem:[%s246 + $0x60] sm:$0xf]
                %273 = vst [vmem:[%s247 + $0x30] sm:$0xf] %v272
                %v274 = vld [vmem:[%s246 + $0x68] sm:$0xf]
                %275 = vst [vmem:[%s247 + $0x34] sm:$0xf] %v274
                %v276 = vld [vmem:[%s246 + $0x70] sm:$0xf]
                %277 = vst [vmem:[%s247 + $0x38] sm:$0xf] %v276
                %v278 = vld [vmem:[%s246 + $0x78] sm:$0xf]
                %279 = vst [vmem:[%s247 + $0x3c] sm:$0xf] %v278
              $region49: #{graphsage_link_predictor.3} parent=43 // loop_footer
                %s245 = sadd.s32 1, %s241
              $region50: #{graphsage_link_predictor.3} parent=43 // loop_footer_branch
                %240 = sbr.rel target = $region46
              $region51: #{graphsage_link_predictor.3} parent=43 // loop_exit
                _
            $region44: #{graphsage_link_predictor.3} parent=35 // pred_fallthru
              _
          $region36: #{graphsage_link_predictor.3} parent=31 // pred_fallthru
            _
          %331 = vnop
        $region32: #{graphsage_link_predictor.3} parent=27 // pred_fallthru
          _
        // Predicated region
        $region70: #{graphsage_link_predictor.3} parent=27 // pred_check
          %p332 = pneg %p72
        $region71: #{graphsage_link_predictor.3} parent=27 // pred_check_branch
          %334 = sbr.rel (%p332) target = $region73
        $region72: #{graphsage_link_predictor.3} parent=27 // pred_region
          %s335 = smul.u32 16, %s20
          %p336 = scmp.lt.s32.totalorder %s335, 31
          %s337 = scalar_select %p336, %s335, 31
          %s338 = smul.addr %s337, 4
          %s339 = scalar_lea.vmem %s1, %s338
          %s340 = smul.u32 16, %s20
        $region73: #{graphsage_link_predictor.3} parent=27 // pred_fallthru
          _
        // Predicated region
        $region74: #{graphsage_link_predictor.3} parent=27 // pred_check
          %p341 = pneg %p98
        $region75: #{graphsage_link_predictor.3} parent=27 // pred_check_branch
          %343 = sbr.rel (%p341) target = $region77
        $region76: #{graphsage_link_predictor.3} parent=27 // pred_region
          %s344 = smul.u32 16, %s19
          %p345 = scmp.lt.s32.totalorder %s344, 31
          %s346 = scalar_select %p345, %s344, 31
          %s347 = smul.addr %s346, 4
          %s348 = scalar_lea.vmem %s2, %s347
          %s349 = smul.u32 16, %s19
        $region77: #{graphsage_link_predictor.3} parent=27 // pred_fallthru
          _
      $region28: #{graphsage_link_predictor.3} parent=5 // pred_fallthru
        _
      %p350 = scmp.le.s32.totalorder 1, %s12
      %p351 = scmp.lt.s32.totalorder %s12, 5
      %p352 = pnand %p350, %p351
      %p353 = pneg %p352
      // Predicated region
      $region78: #{graphsage_link_predictor.3} parent=5 // pred_check
        _
      $region79: #{graphsage_link_predictor.3} parent=5 // pred_check_branch
        %355 = sbr.rel (%p352) target = $region81
      $region80: #{graphsage_link_predictor.3} parent=5 // pred_region
        %s356 = ssub.s32 %s12, 1
        %s357 = sand.u32 %s39, 1
        %s358 = sand.u32 %s39, 1
        %s359 = smul.addr %s358, 64
        %s360 = scalar_lea.vmem [#allocation3], %s359
        // Predicated region
        $region82: #{graphsage_link_predictor.3} parent=80 // pred_check
          %p361 = pneg %p52
        $region83: #{graphsage_link_predictor.3} parent=80 // pred_check_branch
          %363 = sbr.rel (%p361) target = $region85
        $region84: #{graphsage_link_predictor.3} parent=80 // pred_region
          _
        $region85: #{graphsage_link_predictor.3} parent=80 // pred_fallthru
          _
        %s364 = sand.u32 %s39, 1
        %s365 = sand.u32 %s39, 1
        %s366 = smul.addr %s365, 64
        %s367 = scalar_lea.vmem [#allocation3], %s366
        %p368 = pneg %p52
        %p369 = pneg %p49
        %s370 = smul.u32 16, %s22
        %p371 = scmp.lt.s32.totalorder %s370, 31
        %s372 = scalar_select %p371, %s370, 31
        %s373 = smul.addr %s372, 4
        %s374 = scalar_lea.vmem %s1, %s373
        %p375 = pneg %p78
        %p376 = pneg %p75
        %s377 = smul.u32 16, %s21
        %p378 = scmp.lt.s32.totalorder %s377, 31
        %s379 = scalar_select %p378, %s377, 31
        %s380 = smul.addr %s379, 4
        %s381 = scalar_lea.vmem %s2, %s380
        %p382 = pneg %p104
        %p383 = pneg %p101
        %p384 = pneg %p125
        %p385 = pneg %p122
        %p386 = pneg %p146
        %p387 = pneg %p143
        %p388 = pneg %p167
        %p389 = pneg %p164
        %p390 = pneg %p193
        %p391 = pneg %p190
        %s392 = smul.u32 16, %s21
        %p393 = scmp.lt.s32.totalorder %s392, 31
        %s394 = scalar_select %p393, %s392, 31
        %s395 = smul.addr %s394, 8
        %s396 = scalar_lea.vmem %s6, %s395
        %s397 = smul.u32 16, %s21
        %s398 = smul.u32 16, %s22
        %p399 = scmp.lt.s32.totalorder %s398, 31
        %s400 = scalar_select %p399, %s398, 31
        %s401 = smul.addr %s400, 4
        %s402 = scalar_lea.vmem %s1, %s401
        %s403 = smul.u32 16, %s22
        %s404 = smul.u32 16, %s21
        %p405 = scmp.lt.s32.totalorder %s404, 31
        %s406 = scalar_select %p405, %s404, 31
        %s407 = smul.addr %s406, 4
        %s408 = scalar_lea.vmem %s2, %s407
        %s409 = smul.u32 16, %s21
        %s410 = smul.u32 16, %s21
        %p411 = scmp.lt.s32.totalorder %s410, 31
        %s412 = scalar_select %p411, %s410, 31
        %s413 = smul.addr %s412, 8
        %s414 = scalar_lea.vmem %s6, %s413
        %s415 = smul.u32 16, %s21
        %p417 = scmp.eq.s32.totalorder %s22, 0
        // Predicated region
        $region86: #{graphsage_link_predictor.3} parent=80 // pred_check
          %p418 = pneg %p417
        $region87: #{graphsage_link_predictor.3} parent=80 // pred_check_branch
          %420 = sbr.rel (%p418) target = $region89
        $region88: #{graphsage_link_predictor.3} parent=80 // pred_region
          %421 = vst [vmem:[#allocation2] sm:$0xff] 0.0
          %422 = vst [vmem:[#allocation2 + $0x8] sm:$0xff] 0.0
          %423 = vst [vmem:[#allocation2 + $0x10] sm:$0xff] 0.0
          %424 = vst [vmem:[#allocation2 + $0x18] sm:$0xff] 0.0
          %425 = vst [vmem:[#allocation2 + $0x20] sm:$0xff] 0.0
          %426 = vst [vmem:[#allocation2 + $0x28] sm:$0xff] 0.0
          %427 = vst [vmem:[#allocation2 + $0x30] sm:$0xff] 0.0
          %428 = vst [vmem:[#allocation2 + $0x38] sm:$0xff] 0.0
          %429 = vst [vmem:[#allocation2 + $0x40] sm:$0xff] 0.0
          %430 = vst [vmem:[#allocation2 + $0x48] sm:$0xff] 0.0
          %431 = vst [vmem:[#allocation2 + $0x50] sm:$0xff] 0.0
          %432 = vst [vmem:[#allocation2 + $0x58] sm:$0xff] 0.0
          %433 = vst [vmem:[#allocation2 + $0x60] sm:$0xff] 0.0
          %434 = vst [vmem:[#allocation2 + $0x68] sm:$0xff] 0.0
          %435 = vst [vmem:[#allocation2 + $0x70] sm:$0xff] 0.0
          %436 = vst [vmem:[#allocation2 + $0x78] sm:$0xff] 0.0
        $region89: #{graphsage_link_predictor.3} parent=80 // pred_fallthru
          _
        %v437 = vld [vmem:[#allocation2] sm:$0xff]
        %v438 = vld [vmem:[#allocation2 + $0x8] sm:$0xff]
        %v439 = vld [vmem:[#allocation2 + $0x10] sm:$0xff]
        %v440 = vld [vmem:[#allocation2 + $0x18] sm:$0xff]
        %v441 = vld [vmem:[#allocation2 + $0x20] sm:$0xff]
        %v442 = vld [vmem:[#allocation2 + $0x28] sm:$0xff]
        %v443 = vld [vmem:[#allocation2 + $0x30] sm:$0xff]
        %v444 = vld [vmem:[#allocation2 + $0x38] sm:$0xff]
        %v445 = vld [vmem:[#allocation2 + $0x40] sm:$0xff]
        %v446 = vld [vmem:[#allocation2 + $0x48] sm:$0xff]
        %v447 = vld [vmem:[#allocation2 + $0x50] sm:$0xff]
        %v448 = vld [vmem:[#allocation2 + $0x58] sm:$0xff]
        %v449 = vld [vmem:[#allocation2 + $0x60] sm:$0xff]
        %v450 = vld [vmem:[#allocation2 + $0x68] sm:$0xff]
        %v451 = vld [vmem:[#allocation2 + $0x70] sm:$0xff]
        %v452 = vld [vmem:[#allocation2 + $0x78] sm:$0xff]
        %v453 = vld [vmem:[%s360] sm:$0xf]
        %v454 = vld [vmem:[%s360 + $0x4] sm:$0xf]
        %v455 = vld [vmem:[%s360 + $0x8] sm:$0xf]
        %v456 = vld [vmem:[%s360 + $0xc] sm:$0xf]
        %v457 = vld [vmem:[%s360 + $0x10] sm:$0xf]
        %v458 = vld [vmem:[%s360 + $0x14] sm:$0xf]
        %v459 = vld [vmem:[%s360 + $0x18] sm:$0xf]
        %v460 = vld [vmem:[%s360 + $0x1c] sm:$0xf]
        %v461 = vld [vmem:[%s360 + $0x20] sm:$0xf]
        %v462 = vld [vmem:[%s360 + $0x24] sm:$0xf]
        %v463 = vld [vmem:[%s360 + $0x28] sm:$0xf]
        %v464 = vld [vmem:[%s360 + $0x2c] sm:$0xf]
        %v465 = vld [vmem:[%s360 + $0x30] sm:$0xf]
        %v466 = vld [vmem:[%s360 + $0x34] sm:$0xf]
        %v467 = vld [vmem:[%s360 + $0x38] sm:$0xf]
        %v468 = vld [vmem:[%s360 + $0x3c] sm:$0xf]
        %v469 = vld [vmem:[%s402] sm:$0xf]
        %v470 = vld [vmem:[%s402 + $0x4] sm:$0xf]
        %v471 = vld [vmem:[%s402 + $0x8] sm:$0xf]
        %v472 = vld [vmem:[%s402 + $0xc] sm:$0xf]
        %v473 = vld [vmem:[%s402 + $0x10] sm:$0xf]
        %v474 = vld [vmem:[%s402 + $0x14] sm:$0xf]
        %v475 = vld [vmem:[%s402 + $0x18] sm:$0xf]
        %v476 = vld [vmem:[%s402 + $0x1c] sm:$0xf]
        %v477 = vld [vmem:[%s402 + $0x20] sm:$0xf]
        %v478 = vld [vmem:[%s402 + $0x24] sm:$0xf]
        %v479 = vld [vmem:[%s402 + $0x28] sm:$0xf]
        %v480 = vld [vmem:[%s402 + $0x2c] sm:$0xf]
        %v481 = vld [vmem:[%s402 + $0x30] sm:$0xf]
        %v482 = vld [vmem:[%s402 + $0x34] sm:$0xf]
        %v483 = vld [vmem:[%s402 + $0x38] sm:$0xf]
        %v484 = vld [vmem:[%s402 + $0x3c] sm:$0xf]
        %v501 = vunpack.c.l.b16 %v453
        %v502 = vunpack.c.l.b16 %v454
        %v503 = vunpack.c.l.b16 %v455
        %v504 = vunpack.c.l.b16 %v456
        %v505 = vunpack.c.l.b16 %v457
        %v506 = vunpack.c.l.b16 %v458
        %v507 = vunpack.c.l.b16 %v459
        %v508 = vunpack.c.l.b16 %v460
        %v509 = vunpack.c.l.b16 %v461
        %v510 = vunpack.c.l.b16 %v462
        %v511 = vunpack.c.l.b16 %v463
        %v512 = vunpack.c.l.b16 %v464
        %v513 = vunpack.c.l.b16 %v465
        %v514 = vunpack.c.l.b16 %v466
        %v515 = vunpack.c.l.b16 %v467
        %v516 = vunpack.c.l.b16 %v468
        %v517 = vpack.c.b16 %v502, %v501
        %v518 = vpack.c.b16 %v504, %v503
        %v519 = vpack.c.b16 %v506, %v505
        %v520 = vpack.c.b16 %v508, %v507
        %v521 = vpack.c.b16 %v510, %v509
        %v522 = vpack.c.b16 %v512, %v511
        %v523 = vpack.c.b16 %v514, %v513
        %v524 = vpack.c.b16 %v516, %v515
        %v549 = vunpack.c.l.b16 %v469
        %v550 = vunpack.c.l.b16 %v470
        %v551 = vunpack.c.l.b16 %v471
        %v552 = vunpack.c.l.b16 %v472
        %v553 = vunpack.c.l.b16 %v473
        %v554 = vunpack.c.l.b16 %v474
        %v555 = vunpack.c.l.b16 %v475
        %v556 = vunpack.c.l.b16 %v476
        %v557 = vunpack.c.l.b16 %v477
        %v558 = vunpack.c.l.b16 %v478
        %v559 = vunpack.c.l.b16 %v479
        %v560 = vunpack.c.l.b16 %v480
        %v561 = vunpack.c.l.b16 %v481
        %v562 = vunpack.c.l.b16 %v482
        %v563 = vunpack.c.l.b16 %v483
        %v564 = vunpack.c.l.b16 %v484
        %v565 = vpack.c.b16 %v550, %v549
        %v566 = vpack.c.b16 %v552, %v551
        %v567 = vpack.c.b16 %v554, %v553
        %v568 = vpack.c.b16 %v556, %v555
        %v569 = vpack.c.b16 %v558, %v557
        %v570 = vpack.c.b16 %v560, %v559
        %v571 = vpack.c.b16 %v562, %v561
        %v572 = vpack.c.b16 %v564, %v563
        %581 = vmatprep.subr.bf16.mxu0 0
        %582 = vmatpush1.bf16.msra.mxu0 %v565
        %583 = vmatprep.subr.bf16.mxu0 0
        %584 = vmatpush1.bf16.msra.mxu0 %v566
        %585 = vmatprep.subr.bf16.mxu0 0
        %586 = vmatpush1.bf16.msra.mxu0 %v567
        %587 = vmatprep.subr.bf16.mxu0 0
        %588 = vmatpush1.bf16.msra.mxu0 %v568
        %589 = vmatprep.subr.bf16.mxu0 0
        %590 = vmatpush1.bf16.msra.mxu0 %v569
        %591 = vmatprep.subr.bf16.mxu0 0
        %592 = vmatpush1.bf16.msra.mxu0 %v570
        %593 = vmatprep.subr.bf16.mxu0 0
        %594 = vmatpush1.bf16.msra.mxu0 %v571
        %595 = vmatprep.subr.bf16.mxu0 0
        %596 = vmatpush1.bf16.msra.mxu0 %v572
        %597 = vmatprep.subr.bf16.mxu0 0
        %598 = vmatpush1.bf16.msra.mxu0 0
        %599 = vmatprep.subr.bf16.mxu0 0
        %600 = vmatpush1.bf16.msra.mxu0 0
        %601 = vmatprep.subr.bf16.mxu0 0
        %602 = vmatpush1.bf16.msra.mxu0 0
        %603 = vmatprep.subr.bf16.mxu0 0
        %604 = vmatpush1.bf16.msra.mxu0 0
        %605 = vmatprep.subr.bf16.mxu0 0
        %606 = vmatpush1.bf16.msra.mxu0 0
        %607 = vmatprep.subr.bf16.mxu0 0
        %608 = vmatpush1.bf16.msra.mxu0 0
        %609 = vmatprep.subr.bf16.mxu0 0
        %610 = vmatpush1.bf16.msra.mxu0 0
        %611 = vmatprep.subr.bf16.mxu0 0
        %612 = vmatpush1.bf16.msra.mxu0 0
        %613 = vmatprep.mubr.bf16.mxu0 0
        %614 = vmatmul.mubr.bf16.gmra.mrb[0].mxu0 %v517
        %v615 = vpop.f32.mrb[0].mxu0
        %v616 = vadd.f32 0.0, %v615
        %v617 = vpop.f32.mrb[0].mxu0
        %v618 = vpop.f32.mrb[0].mxu0
        %v619 = vadd.f32 0.0, %v618
        %v620 = vpop.f32.mrb[0].mxu0
        %621 = vmatprep.mubr.bf16.mxu0 0
        %622 = vmatmul.mubr.bf16.gmra.mrb[0].mxu0 %v518
        %v623 = vpop.f32.mrb[0].mxu0
        %v624 = vadd.f32 0.0, %v623
        %v625 = vpop.f32.mrb[0].mxu0
        %v626 = vpop.f32.mrb[0].mxu0
        %v627 = vadd.f32 0.0, %v626
        %v628 = vpop.f32.mrb[0].mxu0
        %629 = vmatprep.mubr.bf16.mxu0 0
        %630 = vmatmul.mubr.bf16.gmra.mrb[0].mxu0 %v519
        %v631 = vpop.f32.mrb[0].mxu0
        %v632 = vadd.f32 0.0, %v631
        %v633 = vpop.f32.mrb[0].mxu0
        %v634 = vpop.f32.mrb[0].mxu0
        %v635 = vadd.f32 0.0, %v634
        %v636 = vpop.f32.mrb[0].mxu0
        %637 = vmatprep.mubr.bf16.mxu0 0
        %638 = vmatmul.mubr.bf16.gmra.mrb[0].mxu0 %v520
        %v639 = vpop.f32.mrb[0].mxu0
        %v640 = vadd.f32 0.0, %v639
        %v641 = vpop.f32.mrb[0].mxu0
        %v642 = vpop.f32.mrb[0].mxu0
        %v643 = vadd.f32 0.0, %v642
        %v644 = vpop.f32.mrb[0].mxu0
        %645 = vmatprep.mubr.bf16.mxu0 0
        %646 = vmatmul.mubr.bf16.gmra.mrb[0].mxu0 %v521
        %v647 = vpop.f32.mrb[0].mxu0
        %v648 = vadd.f32 0.0, %v647
        %v649 = vpop.f32.mrb[0].mxu0
        %v650 = vpop.f32.mrb[0].mxu0
        %v651 = vadd.f32 0.0, %v650
        %v652 = vpop.f32.mrb[0].mxu0
        %653 = vmatprep.mubr.bf16.mxu0 0
        %654 = vmatmul.mubr.bf16.gmra.mrb[0].mxu0 %v522
        %v655 = vpop.f32.mrb[0].mxu0
        %v656 = vadd.f32 0.0, %v655
        %v657 = vpop.f32.mrb[0].mxu0
        %v658 = vpop.f32.mrb[0].mxu0
        %v659 = vadd.f32 0.0, %v658
        %v660 = vpop.f32.mrb[0].mxu0
        %661 = vmatprep.mubr.bf16.mxu0 0
        %662 = vmatmul.mubr.bf16.gmra.mrb[0].mxu0 %v523
        %v663 = vpop.f32.mrb[0].mxu0
        %v664 = vadd.f32 0.0, %v663
        %v665 = vpop.f32.mrb[0].mxu0
        %v666 = vpop.f32.mrb[0].mxu0
        %v667 = vadd.f32 0.0, %v666
        %v668 = vpop.f32.mrb[0].mxu0
        %669 = vmatprep.mubr.bf16.mxu0 0
        %670 = vmatmul.mubr.bf16.gmra.mrb[0].mxu0 %v524
        %v671 = vpop.f32.mrb[0].mxu0
        %v672 = vadd.f32 0.0, %v671
        %v673 = vpop.f32.mrb[0].mxu0
        %v674 = vpop.f32.mrb[0].mxu0
        %v675 = vadd.f32 0.0, %v674
        %v676 = vpop.f32.mrb[0].mxu0
        %677 = vdwg.mxu0
        %v678 = vadd.f32 %v437, %v616
        %v679 = vadd.f32 %v438, %v619
        %v680 = vadd.f32 %v439, %v624
        %v681 = vadd.f32 %v440, %v627
        %v682 = vadd.f32 %v441, %v632
        %v683 = vadd.f32 %v442, %v635
        %v684 = vadd.f32 %v443, %v640
        %v685 = vadd.f32 %v444, %v643
        %v686 = vadd.f32 %v445, %v648
        %v687 = vadd.f32 %v446, %v651
        %v688 = vadd.f32 %v447, %v656
        %v689 = vadd.f32 %v448, %v659
        %v690 = vadd.f32 %v449, %v664
        %v691 = vadd.f32 %v450, %v667
        %v692 = vadd.f32 %v451, %v672
        %v693 = vadd.f32 %v452, %v675
        %694 = vst [vmem:[#allocation2] sm:$0xff] %v678
        %695 = vst [vmem:[#allocation2 + $0x8] sm:$0xff] %v679
        %696 = vst [vmem:[#allocation2 + $0x10] sm:$0xff] %v680
        %697 = vst [vmem:[#allocation2 + $0x18] sm:$0xff] %v681
        %698 = vst [vmem:[#allocation2 + $0x20] sm:$0xff] %v682
        %699 = vst [vmem:[#allocation2 + $0x28] sm:$0xff] %v683
        %700 = vst [vmem:[#allocation2 + $0x30] sm:$0xff] %v684
        %701 = vst [vmem:[#allocation2 + $0x38] sm:$0xff] %v685
        %702 = vst [vmem:[#allocation2 + $0x40] sm:$0xff] %v686
        %703 = vst [vmem:[#allocation2 + $0x48] sm:$0xff] %v687
        %704 = vst [vmem:[#allocation2 + $0x50] sm:$0xff] %v688
        %705 = vst [vmem:[#allocation2 + $0x58] sm:$0xff] %v689
        %706 = vst [vmem:[#allocation2 + $0x60] sm:$0xff] %v690
        %707 = vst [vmem:[#allocation2 + $0x68] sm:$0xff] %v691
        %708 = vst [vmem:[#allocation2 + $0x70] sm:$0xff] %v692
        %709 = vst [vmem:[#allocation2 + $0x78] sm:$0xff] %v693
        %p710 = scmp.eq.s32.totalorder %s22, 1
        // Predicated region
        $region90: #{graphsage_link_predictor.3} parent=80 // pred_check
          %p711 = pneg %p710
        $region91: #{graphsage_link_predictor.3} parent=80 // pred_check_branch
          %713 = sbr.rel (%p711) target = $region93
        $region92: #{graphsage_link_predictor.3} parent=80 // pred_region
          %v714 = vld [vmem:[#allocation2] sm:$0xff]
          %v715 = vld [vmem:[#allocation2 + $0x8] sm:$0xff]
          %v716 = vld [vmem:[#allocation2 + $0x10] sm:$0xff]
          %v717 = vld [vmem:[#allocation2 + $0x18] sm:$0xff]
          %v718 = vld [vmem:[#allocation2 + $0x20] sm:$0xff]
          %v719 = vld [vmem:[#allocation2 + $0x28] sm:$0xff]
          %v720 = vld [vmem:[#allocation2 + $0x30] sm:$0xff]
          %v721 = vld [vmem:[#allocation2 + $0x38] sm:$0xff]
          %v722 = vld [vmem:[#allocation2 + $0x40] sm:$0xff]
          %v723 = vld [vmem:[#allocation2 + $0x48] sm:$0xff]
          %v724 = vld [vmem:[#allocation2 + $0x50] sm:$0xff]
          %v725 = vld [vmem:[#allocation2 + $0x58] sm:$0xff]
          %v726 = vld [vmem:[#allocation2 + $0x60] sm:$0xff]
          %v727 = vld [vmem:[#allocation2 + $0x68] sm:$0xff]
          %v728 = vld [vmem:[#allocation2 + $0x70] sm:$0xff]
          %v729 = vld [vmem:[#allocation2 + $0x78] sm:$0xff]
          %v730 = vld [vmem:[%s408] sm:$0xf]
          %v731 = vld [vmem:[%s408 + $0x4] sm:$0xf]
          %v732 = vld [vmem:[%s408 + $0x8] sm:$0xf]
          %v733 = vld [vmem:[%s408 + $0xc] sm:$0xf]
          %v734 = vld [vmem:[%s408 + $0x10] sm:$0xf]
          %v735 = vld [vmem:[%s408 + $0x14] sm:$0xf]
          %v736 = vld [vmem:[%s408 + $0x18] sm:$0xf]
          %v737 = vld [vmem:[%s408 + $0x1c] sm:$0xf]
          %v738 = vld [vmem:[%s408 + $0x20] sm:$0xf]
          %v739 = vld [vmem:[%s408 + $0x24] sm:$0xf]
          %v740 = vld [vmem:[%s408 + $0x28] sm:$0xf]
          %v741 = vld [vmem:[%s408 + $0x2c] sm:$0xf]
          %v742 = vld [vmem:[%s408 + $0x30] sm:$0xf]
          %v743 = vld [vmem:[%s408 + $0x34] sm:$0xf]
          %v744 = vld [vmem:[%s408 + $0x38] sm:$0xf]
          %v745 = vld [vmem:[%s408 + $0x3c] sm:$0xf]
          %v746 = vunpack.c.l.bf16 %v730
          %v747 = vunpack.c.l.bf16 %v731
          %v748 = vunpack.c.l.bf16 %v732
          %v749 = vunpack.c.l.bf16 %v733
          %v750 = vunpack.c.l.bf16 %v734
          %v751 = vunpack.c.l.bf16 %v735
          %v752 = vunpack.c.l.bf16 %v736
          %v753 = vunpack.c.l.bf16 %v737
          %v754 = vunpack.c.l.bf16 %v738
          %v755 = vunpack.c.l.bf16 %v739
          %v756 = vunpack.c.l.bf16 %v740
          %v757 = vunpack.c.l.bf16 %v741
          %v758 = vunpack.c.l.bf16 %v742
          %v759 = vunpack.c.l.bf16 %v743
          %v760 = vunpack.c.l.bf16 %v744
          %v761 = vunpack.c.l.bf16 %v745
          %v762 = vld [vmem:[%s3] sm:$0xff]
          %v763 = vld [vmem:[%s3 + $0x8] sm:$0xff]
          %v764 = vld [vmem:[%s3 + $0x10] sm:$0xff]
          %v765 = vld [vmem:[%s3 + $0x18] sm:$0xff]
          %v766 = vld [vmem:[%s3 + $0x20] sm:$0xff]
          %v767 = vld [vmem:[%s3 + $0x28] sm:$0xff]
          %v768 = vld [vmem:[%s3 + $0x30] sm:$0xff]
          %v769 = vld [vmem:[%s3 + $0x38] sm:$0xff]
          %v770 = vld [vmem:[%s3 + $0x40] sm:$0xff]
          %v771 = vld [vmem:[%s3 + $0x48] sm:$0xff]
          %v772 = vld [vmem:[%s3 + $0x50] sm:$0xff]
          %v773 = vld [vmem:[%s3 + $0x58] sm:$0xff]
          %v774 = vld [vmem:[%s3 + $0x60] sm:$0xff]
          %v775 = vld [vmem:[%s3 + $0x68] sm:$0xff]
          %v776 = vld [vmem:[%s3 + $0x70] sm:$0xff]
          %v777 = vld [vmem:[%s3 + $0x78] sm:$0xff]
          %v778 = vld [vmem:[%s4] sm:$0xff]
          %v779 = vld [vmem:[%s4 + $0x8] sm:$0xff]
          %v780 = vld [vmem:[%s4 + $0x10] sm:$0xff]
          %v781 = vld [vmem:[%s4 + $0x18] sm:$0xff]
          %v782 = vld [vmem:[%s4 + $0x20] sm:$0xff]
          %v783 = vld [vmem:[%s4 + $0x28] sm:$0xff]
          %v784 = vld [vmem:[%s4 + $0x30] sm:$0xff]
          %v785 = vld [vmem:[%s4 + $0x38] sm:$0xff]
          %v786 = vld [vmem:[%s4 + $0x40] sm:$0xff]
          %v787 = vld [vmem:[%s4 + $0x48] sm:$0xff]
          %v788 = vld [vmem:[%s4 + $0x50] sm:$0xff]
          %v789 = vld [vmem:[%s4 + $0x58] sm:$0xff]
          %v790 = vld [vmem:[%s4 + $0x60] sm:$0xff]
          %v791 = vld [vmem:[%s4 + $0x68] sm:$0xff]
          %v792 = vld [vmem:[%s4 + $0x70] sm:$0xff]
          %v793 = vld [vmem:[%s4 + $0x78] sm:$0xff]
          %794 = vmatprep.subr.mxu0 0.0
          %795 = vmatpush1.msra.mxu0 %v778
          %796 = vmatprep.subr.mxu0 0.0
          %797 = vmatpush1.msra.mxu0 %v779
          %798 = vmatprep.subr.mxu0 0.0
          %799 = vmatpush1.msra.mxu0 %v780
          %800 = vmatprep.subr.mxu0 0.0
          %801 = vmatpush1.msra.mxu0 %v781
          %802 = vmatprep.subr.mxu0 0.0
          %803 = vmatpush1.msra.mxu0 %v782
          %804 = vmatprep.subr.mxu0 0.0
          %805 = vmatpush1.msra.mxu0 %v783
          %806 = vmatprep.subr.mxu0 0.0
          %807 = vmatpush1.msra.mxu0 %v784
          %808 = vmatprep.subr.mxu0 0.0
          %809 = vmatpush1.msra.mxu0 %v785
          %810 = vmatprep.subr.mxu0 0.0
          %811 = vmatpush1.msra.mxu0 %v786
          %812 = vmatprep.subr.mxu0 0.0
          %813 = vmatpush1.msra.mxu0 %v787
          %814 = vmatprep.subr.mxu0 0.0
          %815 = vmatpush1.msra.mxu0 %v788
          %816 = vmatprep.subr.mxu0 0.0
          %817 = vmatpush1.msra.mxu0 %v789
          %818 = vmatprep.subr.mxu0 0.0
          %819 = vmatpush1.msra.mxu0 %v790
          %820 = vmatprep.subr.mxu0 0.0
          %821 = vmatpush1.msra.mxu0 %v791
          %822 = vmatprep.subr.mxu0 0.0
          %823 = vmatpush1.msra.mxu0 %v792
          %824 = vmatprep.subr.mxu0 0.0
          %825 = vmatpush1.msra.mxu0 %v793
          %826 = vmatprep.subr.mxu0 0.0
          %827 = vmatpush1.msra.mxu0 0.0
          %828 = vmatprep.subr.mxu0 0.0
          %829 = vmatpush1.msra.mxu0 0.0
          %830 = vmatprep.subr.mxu0 0.0
          %831 = vmatpush1.msra.mxu0 0.0
          %832 = vmatprep.subr.mxu0 0.0
          %833 = vmatpush1.msra.mxu0 0.0
          %834 = vmatprep.subr.mxu0 0.0
          %835 = vmatpush1.msra.mxu0 0.0
          %836 = vmatprep.subr.mxu0 0.0
          %837 = vmatpush1.msra.mxu0 0.0
          %838 = vmatprep.subr.mxu0 0.0
          %839 = vmatpush1.msra.mxu0 0.0
          %840 = vmatprep.subr.mxu0 0.0
          %841 = vmatpush1.msra.mxu0 0.0
          %842 = vmatprep.subr.mxu0 0.0
          %843 = vmatpush1.msra.mxu0 0.0
          %844 = vmatprep.subr.mxu0 0.0
          %845 = vmatpush1.msra.mxu0 0.0
          %846 = vmatprep.subr.mxu0 0.0
          %847 = vmatpush1.msra.mxu0 0.0
          %848 = vmatprep.subr.mxu0 0.0
          %849 = vmatpush1.msra.mxu0 0.0
          %850 = vmatprep.subr.mxu0 0.0
          %851 = vmatpush1.msra.mxu0 0.0
          %852 = vmatprep.subr.mxu0 0.0
          %853 = vmatpush1.msra.mxu0 0.0
          %854 = vmatprep.subr.mxu0 0.0
          %855 = vmatpush1.msra.mxu0 0.0
          %856 = vmatprep.subr.mxu0 0.0
          %857 = vmatpush1.msra.mxu0 0.0
          %858 = vmatprep.mubr.f32.mxu0 0.0
          %859 = vmatmul.mubr.f32.gmra.mrb[0].mxu0 %v746
          %v860 = vpop.f32.mrb[0].mxu0
          %v861 = vadd.f32 0.0, %v860
          %v862 = vpop.f32.mrb[0].mxu0
          %863 = vmatprep.mubr.f32.mxu0 0.0
          %864 = vmatmul.mubr.f32.gmra.mrb[0].mxu0 %v747
          %v865 = vpop.f32.mrb[0].mxu0
          %v866 = vadd.f32 0.0, %v865
          %v867 = vpop.f32.mrb[0].mxu0
          %868 = vmatprep.mubr.f32.mxu0 0.0
          %869 = vmatmul.mubr.f32.gmra.mrb[0].mxu0 %v748
          %v870 = vpop.f32.mrb[0].mxu0
          %v871 = vadd.f32 0.0, %v870
          %v872 = vpop.f32.mrb[0].mxu0
          %873 = vmatprep.mubr.f32.mxu0 0.0
          %874 = vmatmul.mubr.f32.gmra.mrb[0].mxu0 %v749
          %v875 = vpop.f32.mrb[0].mxu0
          %v876 = vadd.f32 0.0, %v875
          %v877 = vpop.f32.mrb[0].mxu0
          %878 = vmatprep.mubr.f32.mxu0 0.0
          %879 = vmatmul.mubr.f32.gmra.mrb[0].mxu0 %v750
          %v880 = vpop.f32.mrb[0].mxu0
          %v881 = vadd.f32 0.0, %v880
          %v882 = vpop.f32.mrb[0].mxu0
          %883 = vmatprep.mubr.f32.mxu0 0.0
          %884 = vmatmul.mubr.f32.gmra.mrb[0].mxu0 %v751
          %v885 = vpop.f32.mrb[0].mxu0
          %v886 = vadd.f32 0.0, %v885
          %v887 = vpop.f32.mrb[0].mxu0
          %888 = vmatprep.mubr.f32.mxu0 0.0
          %889 = vmatmul.mubr.f32.gmra.mrb[0].mxu0 %v752
          %v890 = vpop.f32.mrb[0].mxu0
          %v891 = vadd.f32 0.0, %v890
          %v892 = vpop.f32.mrb[0].mxu0
          %893 = vmatprep.mubr.f32.mxu0 0.0
          %894 = vmatmul.mubr.f32.gmra.mrb[0].mxu0 %v753
          %v895 = vpop.f32.mrb[0].mxu0
          %v896 = vadd.f32 0.0, %v895
          %v897 = vpop.f32.mrb[0].mxu0
          %898 = vmatprep.mubr.f32.mxu0 0.0
          %899 = vmatmul.mubr.f32.gmra.mrb[0].mxu0 %v754
          %v900 = vpop.f32.mrb[0].mxu0
          %v901 = vadd.f32 0.0, %v900
          %v902 = vpop.f32.mrb[0].mxu0
          %903 = vmatprep.mubr.f32.mxu0 0.0
          %904 = vmatmul.mubr.f32.gmra.mrb[0].mxu0 %v755
          %v905 = vpop.f32.mrb[0].mxu0
          %v906 = vadd.f32 0.0, %v905
          %v907 = vpop.f32.mrb[0].mxu0
          %908 = vmatprep.mubr.f32.mxu0 0.0
          %909 = vmatmul.mubr.f32.gmra.mrb[0].mxu0 %v756
          %v910 = vpop.f32.mrb[0].mxu0
          %v911 = vadd.f32 0.0, %v910
          %v912 = vpop.f32.mrb[0].mxu0
          %913 = vmatprep.mubr.f32.mxu0 0.0
          %914 = vmatmul.mubr.f32.gmra.mrb[0].mxu0 %v757
          %v915 = vpop.f32.mrb[0].mxu0
          %v916 = vadd.f32 0.0, %v915
          %v917 = vpop.f32.mrb[0].mxu0
          %918 = vmatprep.mubr.f32.mxu0 0.0
          %919 = vmatmul.mubr.f32.gmra.mrb[0].mxu0 %v758
          %v920 = vpop.f32.mrb[0].mxu0
          %v921 = vadd.f32 0.0, %v920
          %v922 = vpop.f32.mrb[0].mxu0
          %923 = vmatprep.mubr.f32.mxu0 0.0
          %924 = vmatmul.mubr.f32.gmra.mrb[0].mxu0 %v759
          %v925 = vpop.f32.mrb[0].mxu0
          %v926 = vadd.f32 0.0, %v925
          %v927 = vpop.f32.mrb[0].mxu0
          %928 = vmatprep.mubr.f32.mxu0 0.0
          %929 = vmatmul.mubr.f32.gmra.mrb[0].mxu0 %v760
          %v930 = vpop.f32.mrb[0].mxu0
          %v931 = vadd.f32 0.0, %v930
          %v932 = vpop.f32.mrb[0].mxu0
          %933 = vmatprep.mubr.f32.mxu0 0.0
          %934 = vmatmul.mubr.f32.gmra.mrb[0].mxu0 %v761
          %v935 = vpop.f32.mrb[0].mxu0
          %v936 = vadd.f32 0.0, %v935
          %v937 = vpop.f32.mrb[0].mxu0
          %938 = vdwg.mxu0
          %939 = vmatprep.subr.mxu0 0.0
          %940 = vmatpush1.msra.mxu0 %v762
          %941 = vmatprep.subr.mxu0 0.0
          %942 = vmatpush1.msra.mxu0 %v763
          %943 = vmatprep.subr.mxu0 0.0
          %944 = vmatpush1.msra.mxu0 %v764
          %945 = vmatprep.subr.mxu0 0.0
          %946 = vmatpush1.msra.mxu0 %v765
          %947 = vmatprep.subr.mxu0 0.0
          %948 = vmatpush1.msra.mxu0 %v766
          %949 = vmatprep.subr.mxu0 0.0
          %950 = vmatpush1.msra.mxu0 %v767
          %951 = vmatprep.subr.mxu0 0.0
          %952 = vmatpush1.msra.mxu0 %v768
          %953 = vmatprep.subr.mxu0 0.0
          %954 = vmatpush1.msra.mxu0 %v769
          %955 = vmatprep.subr.mxu0 0.0
          %956 = vmatpush1.msra.mxu0 %v770
          %957 = vmatprep.subr.mxu0 0.0
          %958 = vmatpush1.msra.mxu0 %v771
          %959 = vmatprep.subr.mxu0 0.0
          %960 = vmatpush1.msra.mxu0 %v772
          %961 = vmatprep.subr.mxu0 0.0
          %962 = vmatpush1.msra.mxu0 %v773
          %963 = vmatprep.subr.mxu0 0.0
          %964 = vmatpush1.msra.mxu0 %v774
          %965 = vmatprep.subr.mxu0 0.0
          %966 = vmatpush1.msra.mxu0 %v775
          %967 = vmatprep.subr.mxu0 0.0
          %968 = vmatpush1.msra.mxu0 %v776
          %969 = vmatprep.subr.mxu0 0.0
          %970 = vmatpush1.msra.mxu0 %v777
          %971 = vmatprep.subr.mxu0 0.0
          %972 = vmatpush1.msra.mxu0 0.0
          %973 = vmatprep.subr.mxu0 0.0
          %974 = vmatpush1.msra.mxu0 0.0
          %975 = vmatprep.subr.mxu0 0.0
          %976 = vmatpush1.msra.mxu0 0.0
          %977 = vmatprep.subr.mxu0 0.0
          %978 = vmatpush1.msra.mxu0 0.0
          %979 = vmatprep.subr.mxu0 0.0
          %980 = vmatpush1.msra.mxu0 0.0
          %981 = vmatprep.subr.mxu0 0.0
          %982 = vmatpush1.msra.mxu0 0.0
          %983 = vmatprep.subr.mxu0 0.0
          %984 = vmatpush1.msra.mxu0 0.0
          %985 = vmatprep.subr.mxu0 0.0
          %986 = vmatpush1.msra.mxu0 0.0
          %987 = vmatprep.subr.mxu0 0.0
          %988 = vmatpush1.msra.mxu0 0.0
          %989 = vmatprep.subr.mxu0 0.0
          %990 = vmatpush1.msra.mxu0 0.0
          %991 = vmatprep.subr.mxu0 0.0
          %992 = vmatpush1.msra.mxu0 0.0
          %993 = vmatprep.subr.mxu0 0.0
          %994 = vmatpush1.msra.mxu0 0.0
          %995 = vmatprep.subr.mxu0 0.0
          %996 = vmatpush1.msra.mxu0 0.0
          %997 = vmatprep.subr.mxu0 0.0
          %998 = vmatpush1.msra.mxu0 0.0
          %999 = vmatprep.subr.mxu0 0.0
          %1000 = vmatpush1.msra.mxu0 0.0
          %1001 = vmatprep.subr.mxu0 0.0
          %1002 = vmatpush1.msra.mxu0 0.0
          %1003 = vmatprep.mubr.f32.mxu0 0.0
          %1004 = vmatmul.mubr.f32.gmra.mrb[0].mxu0 %v714
          %v1005 = vpop.f32.mrb[0].mxu0
          %v1006 = vadd.f32 %v861, %v1005
          %v1007 = vpop.f32.mrb[0].mxu0
          %1008 = vmatprep.mubr.f32.mxu0 0.0
          %1009 = vmatmul.mubr.f32.gmra.mrb[0].mxu0 %v715
          %v1010 = vpop.f32.mrb[0].mxu0
          %v1011 = vadd.f32 %v866, %v1010
          %v1012 = vpop.f32.mrb[0].mxu0
          %1013 = vmatprep.mubr.f32.mxu0 0.0
          %1014 = vmatmul.mubr.f32.gmra.mrb[0].mxu0 %v716
          %v1015 = vpop.f32.mrb[0].mxu0
          %v1016 = vadd.f32 %v871, %v1015
          %v1017 = vpop.f32.mrb[0].mxu0
          %1018 = vmatprep.mubr.f32.mxu0 0.0
          %1019 = vmatmul.mubr.f32.gmra.mrb[0].mxu0 %v717
          %v1020 = vpop.f32.mrb[0].mxu0
          %v1021 = vadd.f32 %v876, %v1020
          %v1022 = vpop.f32.mrb[0].mxu0
          %1023 = vmatprep.mubr.f32.mxu0 0.0
          %1024 = vmatmul.mubr.f32.gmra.mrb[0].mxu0 %v718
          %v1025 = vpop.f32.mrb[0].mxu0
          %v1026 = vadd.f32 %v881, %v1025
          %v1027 = vpop.f32.mrb[0].mxu0
          %1028 = vmatprep.mubr.f32.mxu0 0.0
          %1029 = vmatmul.mubr.f32.gmra.mrb[0].mxu0 %v719
          %v1030 = vpop.f32.mrb[0].mxu0
          %v1031 = vadd.f32 %v886, %v1030
          %v1032 = vpop.f32.mrb[0].mxu0
          %1033 = vmatprep.mubr.f32.mxu0 0.0
          %1034 = vmatmul.mubr.f32.gmra.mrb[0].mxu0 %v720
          %v1035 = vpop.f32.mrb[0].mxu0
          %v1036 = vadd.f32 %v891, %v1035
          %v1037 = vpop.f32.mrb[0].mxu0
          %1038 = vmatprep.mubr.f32.mxu0 0.0
          %1039 = vmatmul.mubr.f32.gmra.mrb[0].mxu0 %v721
          %v1040 = vpop.f32.mrb[0].mxu0
          %v1041 = vadd.f32 %v896, %v1040
          %v1042 = vpop.f32.mrb[0].mxu0
          %1043 = vmatprep.mubr.f32.mxu0 0.0
          %1044 = vmatmul.mubr.f32.gmra.mrb[0].mxu0 %v722
          %v1045 = vpop.f32.mrb[0].mxu0
          %v1046 = vadd.f32 %v901, %v1045
          %v1047 = vpop.f32.mrb[0].mxu0
          %1048 = vmatprep.mubr.f32.mxu0 0.0
          %1049 = vmatmul.mubr.f32.gmra.mrb[0].mxu0 %v723
          %v1050 = vpop.f32.mrb[0].mxu0
          %v1051 = vadd.f32 %v906, %v1050
          %v1052 = vpop.f32.mrb[0].mxu0
          %1053 = vmatprep.mubr.f32.mxu0 0.0
          %1054 = vmatmul.mubr.f32.gmra.mrb[0].mxu0 %v724
          %v1055 = vpop.f32.mrb[0].mxu0
          %v1056 = vadd.f32 %v911, %v1055
          %v1057 = vpop.f32.mrb[0].mxu0
          %1058 = vmatprep.mubr.f32.mxu0 0.0
          %1059 = vmatmul.mubr.f32.gmra.mrb[0].mxu0 %v725
          %v1060 = vpop.f32.mrb[0].mxu0
          %v1061 = vadd.f32 %v916, %v1060
          %v1062 = vpop.f32.mrb[0].mxu0
          %1063 = vmatprep.mubr.f32.mxu0 0.0
          %1064 = vmatmul.mubr.f32.gmra.mrb[0].mxu0 %v726
          %v1065 = vpop.f32.mrb[0].mxu0
          %v1066 = vadd.f32 %v921, %v1065
          %v1067 = vpop.f32.mrb[0].mxu0
          %1068 = vmatprep.mubr.f32.mxu0 0.0
          %1069 = vmatmul.mubr.f32.gmra.mrb[0].mxu0 %v727
          %v1070 = vpop.f32.mrb[0].mxu0
          %v1071 = vadd.f32 %v926, %v1070
          %v1072 = vpop.f32.mrb[0].mxu0
          %1073 = vmatprep.mubr.f32.mxu0 0.0
          %1074 = vmatmul.mubr.f32.gmra.mrb[0].mxu0 %v728
          %v1075 = vpop.f32.mrb[0].mxu0
          %v1076 = vadd.f32 %v931, %v1075
          %v1077 = vpop.f32.mrb[0].mxu0
          %1078 = vmatprep.mubr.f32.mxu0 0.0
          %1079 = vmatmul.mubr.f32.gmra.mrb[0].mxu0 %v729
          %v1080 = vpop.f32.mrb[0].mxu0
          %v1081 = vadd.f32 %v936, %v1080
          %v1082 = vpop.f32.mrb[0].mxu0
          %1083 = vdwg.mxu0
          %v1084 = vld [vmem:[%s5] sm:$0x1]
          %v1086 = vlaneseq
          %v1087 = vshrl.u32 %v1086, 7
          %v1088 = vsub.s32 0, %v1087
          %v1089 = vrot.slane %v1084, %v1088
          %v1091 = vadd.f32 %v1006, %v1089
          %v1092 = vadd.f32 %v1011, %v1089
          %v1093 = vadd.f32 %v1016, %v1089
          %v1094 = vadd.f32 %v1021, %v1089
          %v1095 = vadd.f32 %v1026, %v1089
          %v1096 = vadd.f32 %v1031, %v1089
          %v1097 = vadd.f32 %v1036, %v1089
          %v1098 = vadd.f32 %v1041, %v1089
          %v1099 = vadd.f32 %v1046, %v1089
          %v1100 = vadd.f32 %v1051, %v1089
          %v1101 = vadd.f32 %v1056, %v1089
          %v1102 = vadd.f32 %v1061, %v1089
          %v1103 = vadd.f32 %v1066, %v1089
          %v1104 = vadd.f32 %v1071, %v1089
          %v1105 = vadd.f32 %v1076, %v1089
          %v1106 = vadd.f32 %v1081, %v1089
          %1107 = vst [vmem:[%s414] sm:$0xff] %v1091
          %1108 = vst [vmem:[%s414 + $0x8] sm:$0xff] %v1092
          %1109 = vst [vmem:[%s414 + $0x10] sm:$0xff] %v1093
          %1110 = vst [vmem:[%s414 + $0x18] sm:$0xff] %v1094
          %1111 = vst [vmem:[%s414 + $0x20] sm:$0xff] %v1095
          %1112 = vst [vmem:[%s414 + $0x28] sm:$0xff] %v1096
          %1113 = vst [vmem:[%s414 + $0x30] sm:$0xff] %v1097
          %1114 = vst [vmem:[%s414 + $0x38] sm:$0xff] %v1098
          %1115 = vst [vmem:[%s414 + $0x40] sm:$0xff] %v1099
          %1116 = vst [vmem:[%s414 + $0x48] sm:$0xff] %v1100
          %1117 = vst [vmem:[%s414 + $0x50] sm:$0xff] %v1101
          %1118 = vst [vmem:[%s414 + $0x58] sm:$0xff] %v1102
          %1119 = vst [vmem:[%s414 + $0x60] sm:$0xff] %v1103
          %1120 = vst [vmem:[%s414 + $0x68] sm:$0xff] %v1104
          %1121 = vst [vmem:[%s414 + $0x70] sm:$0xff] %v1105
          %1122 = vst [vmem:[%s414 + $0x78] sm:$0xff] %v1106
        $region93: #{graphsage_link_predictor.3} parent=80 // pred_fallthru
          _
        %s1123 = smul.u32 16, %s21
        %p1124 = scmp.lt.s32.totalorder %s1123, 31
        %s1125 = scalar_select %p1124, %s1123, 31
        %s1126 = smul.addr %s1125, 8
        %s1127 = scalar_lea.vmem %s6, %s1126
        // Predicated region
        $region94: #{graphsage_link_predictor.3} parent=80 // pred_check
          %p1128 = pneg %p190
        $region95: #{graphsage_link_predictor.3} parent=80 // pred_check_branch
          %1130 = sbr.rel (%p1128) target = $region97
        $region96: #{graphsage_link_predictor.3} parent=80 // pred_region
          %s1131 = smul.u32 16, %s21
        $region97: #{graphsage_link_predictor.3} parent=80 // pred_fallthru
          _
      $region81: #{graphsage_link_predictor.3} parent=5 // pred_fallthru
        _
      %p1132 = scmp.le.s32.totalorder 2, %s12
      // Predicated region
      $region98: #{graphsage_link_predictor.3} parent=5 // pred_check
        %p1133 = pneg %p1132
      $region99: #{graphsage_link_predictor.3} parent=5 // pred_check_branch
        %1135 = sbr.rel (%p1133) target = $region101
      $region100: #{graphsage_link_predictor.3} parent=5 // pred_region
        %s1136 = ssub.s32 %s12, 2
        // Predicated region
        $region102: #{graphsage_link_predictor.3} parent=100 // pred_check
          %p1137 = pneg %p196
        $region103: #{graphsage_link_predictor.3} parent=100 // pred_check_branch
          %1139 = sbr.rel (%p1137) target = $region105
        $region104: #{graphsage_link_predictor.3} parent=100 // pred_region
          %s1140 = smul.u32 16, %s23
          %p1141 = scmp.lt.s32.totalorder %s1140, 31
          %s1142 = scalar_select %p1141, %s1140, 31
          %s1143 = smul.addr %s1142, 8
          %s1144 = scalar_lea.vmem %s6, %s1143
        $region105: #{graphsage_link_predictor.3} parent=100 // pred_fallthru
          _
      $region101: #{graphsage_link_predictor.3} parent=5 // pred_fallthru
        _
    $region6: #{graphsage_link_predictor.3} parent=1 // loop_footer
      %s16 = sadd.s32 1, %s12
    $region7: #{graphsage_link_predictor.3} parent=1 // loop_footer_branch
      %11 = sbr.rel target = $region3
    $region8: #{graphsage_link_predictor.3} parent=1 // loop_exit
      _

// kernel: graphsage_link_predictor.2
$region0: #{graphsage_link_predictor.2}
  #allocation0 [shape = 'u32[]', space=smem, size = 0x4, offset = 0x4, fixed_abs, tag = 'smem constant byte address 0x4 - core index']
  #allocation1 [shape = 'u32[144,128]{1,0:T(1,128)}', space=vmem, size = 0x12000, scoped, tag = 'internal scratch']
  #allocation2 [shape = 'f32[128,128]{1,0:T(8,128)}', space=vmem, size = 0x10000, scoped, tag = 'scratch operand']
  %s0 = inlined_call_operand.vmem [shape: bf16[256,256], index: 0, kind: input, shape index: {}]
  %s1 = inlined_call_operand.vmem [shape: bf16[256,128], index: 1, kind: input, shape index: {}, may-alias: {1,2}]
  %s2 = inlined_call_operand.vmem [shape: bf16[256,128], index: 2, kind: input, shape index: {}, may-alias: {1,2}]
  %s3 = inlined_call_operand.vmem [shape: f32[128,128], index: 3, kind: input, shape index: {}]
  %s4 = inlined_call_operand.vmem [shape: f32[128,128], index: 4, kind: input, shape index: {}]
  %s5 = inlined_call_operand.vmem [shape: f32[1,128], index: 5, kind: input, shape index: {}]
  %s6 = inlined_call_operand.vmem [shape: bf16[256,128], index: 6, kind: output, shape index: {}]
  %s7 = sld [smem:[#allocation0]]
  $region106: #{graphsage_link_predictor.2} parent=0
    _
  %s9 = ssub.s32 1, %s7
  %s10 = scalar_select 0, %s9, %s7
  $region1: #{graphsage_link_predictor.2} parent=0
    #allocation3 [shape = 'u8[65536]{0}', space=vmem, size = 0x10000, scoped, tag = 'input window, operand 0']
    loop: start=0, step=1, limit=6
    $region2: #{graphsage_link_predictor.2} parent=1 // loop_pre_header
      _
    $region3: #{graphsage_link_predictor.2} parent=1 // loop_header
      %s12 = sphi 0, %s16
      %p13 = scmp.ge.s32.totalorder %s12, 6
      %s19 = sphi 0, %s31
      %s20 = sphi 0, %s27
      %s21 = sphi 0, %s19
      %s22 = sphi 0, %s20
      %s23 = sphi 0, %s21
      %s24 = sphi 0, %s22
      %s36 = sphi 0, %s38
      %s39 = sphi 0, %s36
      %s40 = sphi 0, %s39
      %s56 = sphi 0, %s40
      %s62 = sphi 0, %s64
      %s65 = sphi 0, %s62
      %s66 = sphi 0, %s65
      %s82 = sphi 0, %s66
      %s88 = sphi 0, %s90
      %s91 = sphi 0, %s88
      %s92 = sphi 0, %s91
      %s108 = sphi 0, %s92
      %s112 = sphi 0, %s112
      %s114 = sphi 0, %s112
      %s115 = sphi 0, %s114
      %s129 = sphi 0, %s115
      %s133 = sphi 0, %s133
      %s135 = sphi 0, %s133
      %s136 = sphi 0, %s135
      %s150 = sphi 0, %s136
      %s154 = sphi 0, %s154
      %s156 = sphi 0, %s154
      %s157 = sphi 0, %s156
      %s171 = sphi 0, %s157
      %s177 = sphi 0, %s179
      %s180 = sphi 0, %s177
      %s181 = sphi 0, %s180
      %s197 = sphi 0, %s181
    $region4: #{graphsage_link_predictor.2} parent=1 // loop_header_branch
      %15 = sbr.rel (%p13) target = $region8
    $region5: #{graphsage_link_predictor.2} parent=1 // loop_body
      %s17 = ssub.s32 %s12, 1
      %s18 = ssub.s32 %s12, 2
      %s25 = sadd.s32 1, %s20
      %p26 = scmp.ge.s32.totalorder %s25, 2
      %s27 = scalar_select %p26, 0, %s25
      %s28 = sadd.s32 1, %s19
      %s29 = scalar_select %p26, %s28, %s19
      %p30 = scmp.ge.s32.totalorder %s29, 2
      %s31 = scalar_select %p30, 0, %s29
      %s32 = ssub.s32 %s19, %s31
      %s33 = ssub.s32 %s20, %s27
      %s34 = sor.u32 %s32, %s33
      %p35 = scmp.eq.s32.totalorder %s34, 0
      %s37 = sadd.s32 %s36, 1
      %s38 = scalar_select %p35, %s36, %s37
      %p41 = pneg %p35
      %p42 = scmp.eq.s32.totalorder %s12, 3
      %p43 = por %p41, %p42
      %p44 = scmp.ne.s32.totalorder %s36, %s39
      %p45 = scmp.eq.s32.totalorder %s12, 0
      %p46 = por %p44, %p45
      %p47 = scmp.ne.s32.totalorder %s36, %s39
      %p48 = scmp.eq.s32.totalorder %s17, 3
      %p49 = por %p47, %p48
      %p50 = scmp.ne.s32.totalorder %s39, %s40
      %p51 = scmp.eq.s32.totalorder %s17, 0
      %p52 = por %p50, %p51
      %p53 = scmp.ne.s32.totalorder %s39, %s40
      %p54 = scmp.eq.s32.totalorder %s18, 3
      %p55 = por %p53, %p54
      %p57 = scmp.ne.s32.totalorder %s40, %s56
      %p58 = scmp.eq.s32.totalorder %s18, 0
      %p59 = por %p57, %p58
      %s60 = ssub.s32 %s20, %s27
      %p61 = scmp.eq.s32.totalorder %s60, 0
      %s63 = sadd.s32 %s62, 1
      %s64 = scalar_select %p61, %s62, %s63
      %p67 = pneg %p61
      %p68 = scmp.eq.s32.totalorder %s12, 3
      %p69 = por %p67, %p68
      %p70 = scmp.ne.s32.totalorder %s62, %s65
      %p71 = scmp.eq.s32.totalorder %s12, 0
      %p72 = por %p70, %p71
      %p73 = scmp.ne.s32.totalorder %s62, %s65
      %p74 = scmp.eq.s32.totalorder %s17, 3
      %p75 = por %p73, %p74
      %p76 = scmp.ne.s32.totalorder %s65, %s66
      %p77 = scmp.eq.s32.totalorder %s17, 0
      %p78 = por %p76, %p77
      %p79 = scmp.ne.s32.totalorder %s65, %s66
      %p80 = scmp.eq.s32.totalorder %s18, 3
      %p81 = por %p79, %p80
      %p83 = scmp.ne.s32.totalorder %s66, %s82
      %p84 = scmp.eq.s32.totalorder %s18, 0
      %p85 = por %p83, %p84
      %s86 = ssub.s32 %s19, %s31
      %p87 = scmp.eq.s32.totalorder %s86, 0
      %s89 = sadd.s32 %s88, 1
      %s90 = scalar_select %p87, %s88, %s89
      %p93 = pneg %p87
      %p94 = scmp.eq.s32.totalorder %s12, 3
      %p95 = por %p93, %p94
      %p96 = scmp.ne.s32.totalorder %s88, %s91
      %p97 = scmp.eq.s32.totalorder %s12, 0
      %p98 = por %p96, %p97
      %p99 = scmp.ne.s32.totalorder %s88, %s91
      %p100 = scmp.eq.s32.totalorder %s17, 3
      %p101 = por %p99, %p100
      %p102 = scmp.ne.s32.totalorder %s91, %s92
      %p103 = scmp.eq.s32.totalorder %s17, 0
      %p104 = por %p102, %p103
      %p105 = scmp.ne.s32.totalorder %s91, %s92
      %p106 = scmp.eq.s32.totalorder %s18, 3
      %p107 = por %p105, %p106
      %p109 = scmp.ne.s32.totalorder %s92, %s108
      %p110 = scmp.eq.s32.totalorder %s18, 0
      %p111 = por %p109, %p110
      %s113 = sadd.s32 %s112, 1
      %p116 = scmp.eq.s32.totalorder %s12, 3
      %p117 = scmp.ne.s32.totalorder %s112, %s114
      %p118 = scmp.eq.s32.totalorder %s12, 0
      %p119 = por %p117, %p118
      %p120 = scmp.ne.s32.totalorder %s112, %s114
      %p121 = scmp.eq.s32.totalorder %s17, 3
      %p122 = por %p120, %p121
      %p123 = scmp.ne.s32.totalorder %s114, %s115
      %p124 = scmp.eq.s32.totalorder %s17, 0
      %p125 = por %p123, %p124
      %p126 = scmp.ne.s32.totalorder %s114, %s115
      %p127 = scmp.eq.s32.totalorder %s18, 3
      %p128 = por %p126, %p127
      %p130 = scmp.ne.s32.totalorder %s115, %s129
      %p131 = scmp.eq.s32.totalorder %s18, 0
      %p132 = por %p130, %p131
      %s134 = sadd.s32 %s133, 1
      %p137 = scmp.eq.s32.totalorder %s12, 3
      %p138 = scmp.ne.s32.totalorder %s133, %s135
      %p139 = scmp.eq.s32.totalorder %s12, 0
      %p140 = por %p138, %p139
      %p141 = scmp.ne.s32.totalorder %s133, %s135
      %p142 = scmp.eq.s32.totalorder %s17, 3
      %p143 = por %p141, %p142
      %p144 = scmp.ne.s32.totalorder %s135, %s136
      %p145 = scmp.eq.s32.totalorder %s17, 0
      %p146 = por %p144, %p145
      %p147 = scmp.ne.s32.totalorder %s135, %s136
      %p148 = scmp.eq.s32.totalorder %s18, 3
      %p149 = por %p147, %p148
      %p151 = scmp.ne.s32.totalorder %s136, %s150
      %p152 = scmp.eq.s32.totalorder %s18, 0
      %p153 = por %p151, %p152
      %s155 = sadd.s32 %s154, 1
      %p158 = scmp.eq.s32.totalorder %s12, 3
      %p159 = scmp.ne.s32.totalorder %s154, %s156
      %p160 = scmp.eq.s32.totalorder %s12, 0
      %p161 = por %p159, %p160
      %p162 = scmp.ne.s32.totalorder %s154, %s156
      %p163 = scmp.eq.s32.totalorder %s17, 3
      %p164 = por %p162, %p163
      %p165 = scmp.ne.s32.totalorder %s156, %s157
      %p166 = scmp.eq.s32.totalorder %s17, 0
      %p167 = por %p165, %p166
      %p168 = scmp.ne.s32.totalorder %s156, %s157
      %p169 = scmp.eq.s32.totalorder %s18, 3
      %p170 = por %p168, %p169
      %p172 = scmp.ne.s32.totalorder %s157, %s171
      %p173 = scmp.eq.s32.totalorder %s18, 0
      %p174 = por %p172, %p173
      %s175 = ssub.s32 %s19, %s31
      %p176 = scmp.eq.s32.totalorder %s175, 0
      %s178 = sadd.s32 %s177, 1
      %s179 = scalar_select %p176, %s177, %s178
      %p182 = pneg %p176
      %p183 = scmp.eq.s32.totalorder %s12, 3
      %p184 = por %p182, %p183
      %p185 = scmp.ne.s32.totalorder %s177, %s180
      %p186 = scmp.eq.s32.totalorder %s12, 0
      %p187 = por %p185, %p186
      %p188 = scmp.ne.s32.totalorder %s177, %s180
      %p189 = scmp.eq.s32.totalorder %s17, 3
      %p190 = por %p188, %p189
      %p191 = scmp.ne.s32.totalorder %s180, %s181
      %p192 = scmp.eq.s32.totalorder %s17, 0
      %p193 = por %p191, %p192
      %p194 = scmp.ne.s32.totalorder %s180, %s181
      %p195 = scmp.eq.s32.totalorder %s18, 3
      %p196 = por %p194, %p195
      %p198 = scmp.ne.s32.totalorder %s181, %s197
      %p199 = scmp.eq.s32.totalorder %s18, 0
      %p200 = por %p198, %p199
      %p201 = scmp.le.s32.totalorder 1, %s12
      %p202 = scmp.lt.s32.totalorder %s12, 5
      %p203 = pnand %p201, %p202
      %p204 = pneg %p203
      // Predicated region
      $region9: #{graphsage_link_predictor.2} parent=5 // pred_check
        _
      $region10: #{graphsage_link_predictor.2} parent=5 // pred_check_branch
        %206 = sbr.rel (%p203) target = $region12
      $region11: #{graphsage_link_predictor.2} parent=5 // pred_region
        %s207 = ssub.s32 %s12, 1
        // Predicated region
        $region13: #{graphsage_link_predictor.2} parent=11 // pred_check
          %p208 = pneg %p125
        $region14: #{graphsage_link_predictor.2} parent=11 // pred_check_branch
          %210 = sbr.rel (%p208) target = $region16
        $region15: #{graphsage_link_predictor.2} parent=11 // pred_region
          _
        $region16: #{graphsage_link_predictor.2} parent=11 // pred_fallthru
          _
        // Predicated region
        $region17: #{graphsage_link_predictor.2} parent=11 // pred_check
          %p211 = pneg %p146
        $region18: #{graphsage_link_predictor.2} parent=11 // pred_check_branch
          %213 = sbr.rel (%p211) target = $region20
        $region19: #{graphsage_link_predictor.2} parent=11 // pred_region
          _
        $region20: #{graphsage_link_predictor.2} parent=11 // pred_fallthru
          _
        // Predicated region
        $region21: #{graphsage_link_predictor.2} parent=11 // pred_check
          %p214 = pneg %p167
        $region22: #{graphsage_link_predictor.2} parent=11 // pred_check_branch
          %216 = sbr.rel (%p214) target = $region24
        $region23: #{graphsage_link_predictor.2} parent=11 // pred_region
          _
        $region24: #{graphsage_link_predictor.2} parent=11 // pred_fallthru
          _
      $region12: #{graphsage_link_predictor.2} parent=5 // pred_fallthru
        _
      %p217 = scmp.lt.s32.totalorder %s12, 4
      // Predicated region
      $region25: #{graphsage_link_predictor.2} parent=5 // pred_check
        %p218 = pneg %p217
      $region26: #{graphsage_link_predictor.2} parent=5 // pred_check_branch
        %220 = sbr.rel (%p218) target = $region28
      $region27: #{graphsage_link_predictor.2} parent=5 // pred_region
        // Predicated region
        $region29: #{graphsage_link_predictor.2} parent=27 // pred_check
          %p221 = pneg %p46
        $region30: #{graphsage_link_predictor.2} parent=27 // pred_check_branch
          %223 = sbr.rel (%p221) target = $region32
        $region31: #{graphsage_link_predictor.2} parent=27 // pred_region
          %s224 = sand.u32 %s36, 1
          %s225 = sand.u32 %s36, 1
          %s226 = smul.addr %s225, 64
          %s227 = scalar_lea.vmem [#allocation3], %s226
          %s228 = smul.u32 16, %s19
          %s229 = smul.addr %s228, 2
          %s230 = sadd.s32 %s20, %s229
          %s231 = smul.addr %s230, 4
          %s232 = scalar_lea.vmem %s0, %s231
          // Predicated region
          $region33: #{graphsage_link_predictor.2} parent=31 // pred_check
            _
          $region34: #{graphsage_link_predictor.2} parent=31 // pred_check_branch
            %234 = sbr.rel (0) target = $region36
          $region35: #{graphsage_link_predictor.2} parent=31 // pred_region
            // Predicated region
            $region37: #{graphsage_link_predictor.2} parent=35 // pred_check
              _
            $region38: #{graphsage_link_predictor.2} parent=35 // pred_check_branch
              %236 = sbr.rel target = $region40
            $region39: #{graphsage_link_predictor.2} parent=35 // pred_region
              // Predicated region
              $region52: #{graphsage_link_predictor.2} parent=39 // pred_check
                _
              $region53: #{graphsage_link_predictor.2} parent=39 // pred_check_branch
                %281 = sbr.rel (0) target = $region55
              $region54: #{graphsage_link_predictor.2} parent=39 // pred_region
                loop: start=0, step=1, limit=1
                $region56: #{graphsage_link_predictor.2} parent=54 // loop_pre_header
                  _
                $region57: #{graphsage_link_predictor.2} parent=54 // loop_header
                  %s283 = sphi 0, %s287
                  %p284 = scmp.ge.s32.totalorder %s283, 1
                  %s288 = sphi %s232, %s232
                  %s289 = sphi %s227, %s227
                $region58: #{graphsage_link_predictor.2} parent=54 // loop_header_branch
                  %286 = sbr.rel (%p284) target = $region62
                $region59: #{graphsage_link_predictor.2} parent=54 // loop_body
                  _
                $region60: #{graphsage_link_predictor.2} parent=54 // loop_footer
                  %s287 = sadd.s32 1, %s283
                $region61: #{graphsage_link_predictor.2} parent=54 // loop_footer_branch
                  %282 = sbr.rel target = $region57
                $region62: #{graphsage_link_predictor.2} parent=54 // loop_exit
                  _
                loop: start=0, step=1, limit=1
                $region63: #{graphsage_link_predictor.2} parent=54 // loop_pre_header
                  _
                $region64: #{graphsage_link_predictor.2} parent=54 // loop_header
                  %s292 = sphi 0, %s296
                  %p293 = scmp.ge.s32.totalorder %s292, 1
                  %s297 = sphi %s232, %s232
                  %s298 = sphi %s227, %s227
                $region65: #{graphsage_link_predictor.2} parent=54 // loop_header_branch
                  %295 = sbr.rel (%p293) target = $region69
                $region66: #{graphsage_link_predictor.2} parent=54 // loop_body
                  %v299 = vld [vmem:[%s297] sm:$0xf]
                  %300 = vst [vmem:[%s298] sm:$0xf] %v299
                  %v301 = vld [vmem:[%s297 + $0x8] sm:$0xf]
                  %302 = vst [vmem:[%s298 + $0x4] sm:$0xf] %v301
                  %v303 = vld [vmem:[%s297 + $0x10] sm:$0xf]
                  %304 = vst [vmem:[%s298 + $0x8] sm:$0xf] %v303
                  %v305 = vld [vmem:[%s297 + $0x18] sm:$0xf]
                  %306 = vst [vmem:[%s298 + $0xc] sm:$0xf] %v305
                  %v307 = vld [vmem:[%s297 + $0x20] sm:$0xf]
                  %308 = vst [vmem:[%s298 + $0x10] sm:$0xf] %v307
                  %v309 = vld [vmem:[%s297 + $0x28] sm:$0xf]
                  %310 = vst [vmem:[%s298 + $0x14] sm:$0xf] %v309
                  %v311 = vld [vmem:[%s297 + $0x30] sm:$0xf]
                  %312 = vst [vmem:[%s298 + $0x18] sm:$0xf] %v311
                  %v313 = vld [vmem:[%s297 + $0x38] sm:$0xf]
                  %314 = vst [vmem:[%s298 + $0x1c] sm:$0xf] %v313
                  %v315 = vld [vmem:[%s297 + $0x40] sm:$0xf]
                  %316 = vst [vmem:[%s298 + $0x20] sm:$0xf] %v315
                  %v317 = vld [vmem:[%s297 + $0x48] sm:$0xf]
                  %318 = vst [vmem:[%s298 + $0x24] sm:$0xf] %v317
                  %v319 = vld [vmem:[%s297 + $0x50] sm:$0xf]
                  %320 = vst [vmem:[%s298 + $0x28] sm:$0xf] %v319
                  %v321 = vld [vmem:[%s297 + $0x58] sm:$0xf]
                  %322 = vst [vmem:[%s298 + $0x2c] sm:$0xf] %v321
                  %v323 = vld [vmem:[%s297 + $0x60] sm:$0xf]
                  %324 = vst [vmem:[%s298 + $0x30] sm:$0xf] %v323
                  %v325 = vld [vmem:[%s297 + $0x68] sm:$0xf]
                  %326 = vst [vmem:[%s298 + $0x34] sm:$0xf] %v325
                  %v327 = vld [vmem:[%s297 + $0x70] sm:$0xf]
                  %328 = vst [vmem:[%s298 + $0x38] sm:$0xf] %v327
                  %v329 = vld [vmem:[%s297 + $0x78] sm:$0xf]
                  %330 = vst [vmem:[%s298 + $0x3c] sm:$0xf] %v329
                $region67: #{graphsage_link_predictor.2} parent=54 // loop_footer
                  %s296 = sadd.s32 1, %s292
                $region68: #{graphsage_link_predictor.2} parent=54 // loop_footer_branch
                  %291 = sbr.rel target = $region64
                $region69: #{graphsage_link_predictor.2} parent=54 // loop_exit
                  _
              $region55: #{graphsage_link_predictor.2} parent=39 // pred_fallthru
                _
            $region40: #{graphsage_link_predictor.2} parent=35 // pred_fallthru
              _
            // Predicated region
            $region41: #{graphsage_link_predictor.2} parent=35 // pred_check
              _
            $region42: #{graphsage_link_predictor.2} parent=35 // pred_check_branch
              %238 = sbr.rel (0) target = $region44
            $region43: #{graphsage_link_predictor.2} parent=35 // pred_region
              loop: start=0, step=1, limit=1
              $region45: #{graphsage_link_predictor.2} parent=43 // loop_pre_header
                _
              $region46: #{graphsage_link_predictor.2} parent=43 // loop_header
                %s241 = sphi 0, %s245
                %p242 = scmp.ge.s32.totalorder %s241, 1
                %s246 = sphi %s232, %s232
                %s247 = sphi %s227, %s227
              $region47: #{graphsage_link_predictor.2} parent=43 // loop_header_branch
                %244 = sbr.rel (%p242) target = $region51
              $region48: #{graphsage_link_predictor.2} parent=43 // loop_body
                %v248 = vld [vmem:[%s246] sm:$0xf]
                %249 = vst [vmem:[%s247] sm:$0xf] %v248
                %v250 = vld [vmem:[%s246 + $0x8] sm:$0xf]
                %251 = vst [vmem:[%s247 + $0x4] sm:$0xf] %v250
                %v252 = vld [vmem:[%s246 + $0x10] sm:$0xf]
                %253 = vst [vmem:[%s247 + $0x8] sm:$0xf] %v252
                %v254 = vld [vmem:[%s246 + $0x18] sm:$0xf]
                %255 = vst [vmem:[%s247 + $0xc] sm:$0xf] %v254
                %v256 = vld [vmem:[%s246 + $0x20] sm:$0xf]
                %257 = vst [vmem:[%s247 + $0x10] sm:$0xf] %v256
                %v258 = vld [vmem:[%s246 + $0x28] sm:$0xf]
                %259 = vst [vmem:[%s247 + $0x14] sm:$0xf] %v258
                %v260 = vld [vmem:[%s246 + $0x30] sm:$0xf]
                %261 = vst [vmem:[%s247 + $0x18] sm:$0xf] %v260
                %v262 = vld [vmem:[%s246 + $0x38] sm:$0xf]
                %263 = vst [vmem:[%s247 + $0x1c] sm:$0xf] %v262
                %v264 = vld [vmem:[%s246 + $0x40] sm:$0xf]
                %265 = vst [vmem:[%s247 + $0x20] sm:$0xf] %v264
                %v266 = vld [vmem:[%s246 + $0x48] sm:$0xf]
                %267 = vst [vmem:[%s247 + $0x24] sm:$0xf] %v266
                %v268 = vld [vmem:[%s246 + $0x50] sm:$0xf]
                %269 = vst [vmem:[%s247 + $0x28] sm:$0xf] %v268
                %v270 = vld [vmem:[%s246 + $0x58] sm:$0xf]
                %271 = vst [vmem:[%s247 + $0x2c] sm:$0xf] %v270
                %v272 = vld [vmem:[%s246 + $0x60] sm:$0xf]
                %273 = vst [vmem:[%s247 + $0x30] sm:$0xf] %v272
                %v274 = vld [vmem:[%s246 + $0x68] sm:$0xf]
                %275 = vst [vmem:[%s247 + $0x34] sm:$0xf] %v274
                %v276 = vld [vmem:[%s246 + $0x70] sm:$0xf]
                %277 = vst [vmem:[%s247 + $0x38] sm:$0xf] %v276
                %v278 = vld [vmem:[%s246 + $0x78] sm:$0xf]
                %279 = vst [vmem:[%s247 + $0x3c] sm:$0xf] %v278
              $region49: #{graphsage_link_predictor.2} parent=43 // loop_footer
                %s245 = sadd.s32 1, %s241
              $region50: #{graphsage_link_predictor.2} parent=43 // loop_footer_branch
                %240 = sbr.rel target = $region46
              $region51: #{graphsage_link_predictor.2} parent=43 // loop_exit
                _
            $region44: #{graphsage_link_predictor.2} parent=35 // pred_fallthru
              _
          $region36: #{graphsage_link_predictor.2} parent=31 // pred_fallthru
            _
          %331 = vnop
        $region32: #{graphsage_link_predictor.2} parent=27 // pred_fallthru
          _
        // Predicated region
        $region70: #{graphsage_link_predictor.2} parent=27 // pred_check
          %p332 = pneg %p72
        $region71: #{graphsage_link_predictor.2} parent=27 // pred_check_branch
          %334 = sbr.rel (%p332) target = $region73
        $region72: #{graphsage_link_predictor.2} parent=27 // pred_region
          %s335 = smul.u32 16, %s20
          %p336 = scmp.lt.s32.totalorder %s335, 31
          %s337 = scalar_select %p336, %s335, 31
          %s338 = smul.addr %s337, 4
          %s339 = scalar_lea.vmem %s1, %s338
          %s340 = smul.u32 16, %s20
        $region73: #{graphsage_link_predictor.2} parent=27 // pred_fallthru
          _
        // Predicated region
        $region74: #{graphsage_link_predictor.2} parent=27 // pred_check
          %p341 = pneg %p98
        $region75: #{graphsage_link_predictor.2} parent=27 // pred_check_branch
          %343 = sbr.rel (%p341) target = $region77
        $region76: #{graphsage_link_predictor.2} parent=27 // pred_region
          %s344 = smul.u32 16, %s19
          %p345 = scmp.lt.s32.totalorder %s344, 31
          %s346 = scalar_select %p345, %s344, 31
          %s347 = smul.addr %s346, 4
          %s348 = scalar_lea.vmem %s2, %s347
          %s349 = smul.u32 16, %s19
        $region77: #{graphsage_link_predictor.2} parent=27 // pred_fallthru
          _
      $region28: #{graphsage_link_predictor.2} parent=5 // pred_fallthru
        _
      %p350 = scmp.le.s32.totalorder 1, %s12
      %p351 = scmp.lt.s32.totalorder %s12, 5
      %p352 = pnand %p350, %p351
      %p353 = pneg %p352
      // Predicated region
      $region78: #{graphsage_link_predictor.2} parent=5 // pred_check
        _
      $region79: #{graphsage_link_predictor.2} parent=5 // pred_check_branch
        %355 = sbr.rel (%p352) target = $region81
      $region80: #{graphsage_link_predictor.2} parent=5 // pred_region
        %s356 = ssub.s32 %s12, 1
        %s357 = sand.u32 %s39, 1
        %s358 = sand.u32 %s39, 1
        %s359 = smul.addr %s358, 64
        %s360 = scalar_lea.vmem [#allocation3], %s359
        // Predicated region
        $region82: #{graphsage_link_predictor.2} parent=80 // pred_check
          %p361 = pneg %p52
        $region83: #{graphsage_link_predictor.2} parent=80 // pred_check_branch
          %363 = sbr.rel (%p361) target = $region85
        $region84: #{graphsage_link_predictor.2} parent=80 // pred_region
          _
        $region85: #{graphsage_link_predictor.2} parent=80 // pred_fallthru
          _
        %s364 = sand.u32 %s39, 1
        %s365 = sand.u32 %s39, 1
        %s366 = smul.addr %s365, 64
        %s367 = scalar_lea.vmem [#allocation3], %s366
        %p368 = pneg %p52
        %p369 = pneg %p49
        %s370 = smul.u32 16, %s22
        %p371 = scmp.lt.s32.totalorder %s370, 31
        %s372 = scalar_select %p371, %s370, 31
        %s373 = smul.addr %s372, 4
        %s374 = scalar_lea.vmem %s1, %s373
        %p375 = pneg %p78
        %p376 = pneg %p75
        %s377 = smul.u32 16, %s21
        %p378 = scmp.lt.s32.totalorder %s377, 31
        %s379 = scalar_select %p378, %s377, 31
        %s380 = smul.addr %s379, 4
        %s381 = scalar_lea.vmem %s2, %s380
        %p382 = pneg %p104
        %p383 = pneg %p101
        %p384 = pneg %p125
        %p385 = pneg %p122
        %p386 = pneg %p146
        %p387 = pneg %p143
        %p388 = pneg %p167
        %p389 = pneg %p164
        %p390 = pneg %p193
        %p391 = pneg %p190
        %s392 = smul.u32 16, %s21
        %p393 = scmp.lt.s32.totalorder %s392, 31
        %s394 = scalar_select %p393, %s392, 31
        %s395 = smul.addr %s394, 4
        %s396 = scalar_lea.vmem %s6, %s395
        %s397 = smul.u32 16, %s21
        %s398 = smul.u32 16, %s22
        %p399 = scmp.lt.s32.totalorder %s398, 31
        %s400 = scalar_select %p399, %s398, 31
        %s401 = smul.addr %s400, 4
        %s402 = scalar_lea.vmem %s1, %s401
        %s403 = smul.u32 16, %s22
        %s404 = smul.u32 16, %s21
        %p405 = scmp.lt.s32.totalorder %s404, 31
        %s406 = scalar_select %p405, %s404, 31
        %s407 = smul.addr %s406, 4
        %s408 = scalar_lea.vmem %s2, %s407
        %s409 = smul.u32 16, %s21
        %s410 = smul.u32 16, %s21
        %p411 = scmp.lt.s32.totalorder %s410, 31
        %s412 = scalar_select %p411, %s410, 31
        %s413 = smul.addr %s412, 4
        %s414 = scalar_lea.vmem %s6, %s413
        %s415 = smul.u32 16, %s21
        %p417 = scmp.eq.s32.totalorder %s22, 0
        // Predicated region
        $region86: #{graphsage_link_predictor.2} parent=80 // pred_check
          %p418 = pneg %p417
        $region87: #{graphsage_link_predictor.2} parent=80 // pred_check_branch
          %420 = sbr.rel (%p418) target = $region89
        $region88: #{graphsage_link_predictor.2} parent=80 // pred_region
          %421 = vst [vmem:[#allocation2] sm:$0xff] 0.0
          %422 = vst [vmem:[#allocation2 + $0x8] sm:$0xff] 0.0
          %423 = vst [vmem:[#allocation2 + $0x10] sm:$0xff] 0.0
          %424 = vst [vmem:[#allocation2 + $0x18] sm:$0xff] 0.0
          %425 = vst [vmem:[#allocation2 + $0x20] sm:$0xff] 0.0
          %426 = vst [vmem:[#allocation2 + $0x28] sm:$0xff] 0.0
          %427 = vst [vmem:[#allocation2 + $0x30] sm:$0xff] 0.0
          %428 = vst [vmem:[#allocation2 + $0x38] sm:$0xff] 0.0
          %429 = vst [vmem:[#allocation2 + $0x40] sm:$0xff] 0.0
          %430 = vst [vmem:[#allocation2 + $0x48] sm:$0xff] 0.0
          %431 = vst [vmem:[#allocation2 + $0x50] sm:$0xff] 0.0
          %432 = vst [vmem:[#allocation2 + $0x58] sm:$0xff] 0.0
          %433 = vst [vmem:[#allocation2 + $0x60] sm:$0xff] 0.0
          %434 = vst [vmem:[#allocation2 + $0x68] sm:$0xff] 0.0
          %435 = vst [vmem:[#allocation2 + $0x70] sm:$0xff] 0.0
          %436 = vst [vmem:[#allocation2 + $0x78] sm:$0xff] 0.0
        $region89: #{graphsage_link_predictor.2} parent=80 // pred_fallthru
          _
        %v437 = vld [vmem:[#allocation2] sm:$0xff]
        %v438 = vld [vmem:[#allocation2 + $0x8] sm:$0xff]
        %v439 = vld [vmem:[#allocation2 + $0x10] sm:$0xff]
        %v440 = vld [vmem:[#allocation2 + $0x18] sm:$0xff]
        %v441 = vld [vmem:[#allocation2 + $0x20] sm:$0xff]
        %v442 = vld [vmem:[#allocation2 + $0x28] sm:$0xff]
        %v443 = vld [vmem:[#allocation2 + $0x30] sm:$0xff]
        %v444 = vld [vmem:[#allocation2 + $0x38] sm:$0xff]
        %v445 = vld [vmem:[#allocation2 + $0x40] sm:$0xff]
        %v446 = vld [vmem:[#allocation2 + $0x48] sm:$0xff]
        %v447 = vld [vmem:[#allocation2 + $0x50] sm:$0xff]
        %v448 = vld [vmem:[#allocation2 + $0x58] sm:$0xff]
        %v449 = vld [vmem:[#allocation2 + $0x60] sm:$0xff]
        %v450 = vld [vmem:[#allocation2 + $0x68] sm:$0xff]
        %v451 = vld [vmem:[#allocation2 + $0x70] sm:$0xff]
        %v452 = vld [vmem:[#allocation2 + $0x78] sm:$0xff]
        %v453 = vld [vmem:[%s360] sm:$0xf]
        %v454 = vld [vmem:[%s360 + $0x4] sm:$0xf]
        %v455 = vld [vmem:[%s360 + $0x8] sm:$0xf]
        %v456 = vld [vmem:[%s360 + $0xc] sm:$0xf]
        %v457 = vld [vmem:[%s360 + $0x10] sm:$0xf]
        %v458 = vld [vmem:[%s360 + $0x14] sm:$0xf]
        %v459 = vld [vmem:[%s360 + $0x18] sm:$0xf]
        %v460 = vld [vmem:[%s360 + $0x1c] sm:$0xf]
        %v461 = vld [vmem:[%s360 + $0x20] sm:$0xf]
        %v462 = vld [vmem:[%s360 + $0x24] sm:$0xf]
        %v463 = vld [vmem:[%s360 + $0x28] sm:$0xf]
        %v464 = vld [vmem:[%s360 + $0x2c] sm:$0xf]
        %v465 = vld [vmem:[%s360 + $0x30] sm:$0xf]
        %v466 = vld [vmem:[%s360 + $0x34] sm:$0xf]
        %v467 = vld [vmem:[%s360 + $0x38] sm:$0xf]
        %v468 = vld [vmem:[%s360 + $0x3c] sm:$0xf]
        %v469 = vld [vmem:[%s402] sm:$0xf]
        %v470 = vld [vmem:[%s402 + $0x4] sm:$0xf]
        %v471 = vld [vmem:[%s402 + $0x8] sm:$0xf]
        %v472 = vld [vmem:[%s402 + $0xc] sm:$0xf]
        %v473 = vld [vmem:[%s402 + $0x10] sm:$0xf]
        %v474 = vld [vmem:[%s402 + $0x14] sm:$0xf]
        %v475 = vld [vmem:[%s402 + $0x18] sm:$0xf]
        %v476 = vld [vmem:[%s402 + $0x1c] sm:$0xf]
        %v477 = vld [vmem:[%s402 + $0x20] sm:$0xf]
        %v478 = vld [vmem:[%s402 + $0x24] sm:$0xf]
        %v479 = vld [vmem:[%s402 + $0x28] sm:$0xf]
        %v480 = vld [vmem:[%s402 + $0x2c] sm:$0xf]
        %v481 = vld [vmem:[%s402 + $0x30] sm:$0xf]
        %v482 = vld [vmem:[%s402 + $0x34] sm:$0xf]
        %v483 = vld [vmem:[%s402 + $0x38] sm:$0xf]
        %v484 = vld [vmem:[%s402 + $0x3c] sm:$0xf]
        %v501 = vunpack.c.l.b16 %v453
        %v502 = vunpack.c.l.b16 %v454
        %v503 = vunpack.c.l.b16 %v455
        %v504 = vunpack.c.l.b16 %v456
        %v505 = vunpack.c.l.b16 %v457
        %v506 = vunpack.c.l.b16 %v458
        %v507 = vunpack.c.l.b16 %v459
        %v508 = vunpack.c.l.b16 %v460
        %v509 = vunpack.c.l.b16 %v461
        %v510 = vunpack.c.l.b16 %v462
        %v511 = vunpack.c.l.b16 %v463
        %v512 = vunpack.c.l.b16 %v464
        %v513 = vunpack.c.l.b16 %v465
        %v514 = vunpack.c.l.b16 %v466
        %v515 = vunpack.c.l.b16 %v467
        %v516 = vunpack.c.l.b16 %v468
        %v517 = vpack.c.b16 %v502, %v501
        %v518 = vpack.c.b16 %v504, %v503
        %v519 = vpack.c.b16 %v506, %v505
        %v520 = vpack.c.b16 %v508, %v507
        %v521 = vpack.c.b16 %v510, %v509
        %v522 = vpack.c.b16 %v512, %v511
        %v523 = vpack.c.b16 %v514, %v513
        %v524 = vpack.c.b16 %v516, %v515
        %v549 = vunpack.c.l.b16 %v469
        %v550 = vunpack.c.l.b16 %v470
        %v551 = vunpack.c.l.b16 %v471
        %v552 = vunpack.c.l.b16 %v472
        %v553 = vunpack.c.l.b16 %v473
        %v554 = vunpack.c.l.b16 %v474
        %v555 = vunpack.c.l.b16 %v475
        %v556 = vunpack.c.l.b16 %v476
        %v557 = vunpack.c.l.b16 %v477
        %v558 = vunpack.c.l.b16 %v478
        %v559 = vunpack.c.l.b16 %v479
        %v560 = vunpack.c.l.b16 %v480
        %v561 = vunpack.c.l.b16 %v481
        %v562 = vunpack.c.l.b16 %v482
        %v563 = vunpack.c.l.b16 %v483
        %v564 = vunpack.c.l.b16 %v484
        %v565 = vpack.c.b16 %v550, %v549
        %v566 = vpack.c.b16 %v552, %v551
        %v567 = vpack.c.b16 %v554, %v553
        %v568 = vpack.c.b16 %v556, %v555
        %v569 = vpack.c.b16 %v558, %v557
        %v570 = vpack.c.b16 %v560, %v559
        %v571 = vpack.c.b16 %v562, %v561
        %v572 = vpack.c.b16 %v564, %v563
        %581 = vmatprep.subr.bf16.mxu0 0
        %582 = vmatpush1.bf16.msra.mxu0 %v565
        %583 = vmatprep.subr.bf16.mxu0 0
        %584 = vmatpush1.bf16.msra.mxu0 %v566
        %585 = vmatprep.subr.bf16.mxu0 0
        %586 = vmatpush1.bf16.msra.mxu0 %v567
        %587 = vmatprep.subr.bf16.mxu0 0
        %588 = vmatpush1.bf16.msra.mxu0 %v568
        %589 = vmatprep.subr.bf16.mxu0 0
        %590 = vmatpush1.bf16.msra.mxu0 %v569
        %591 = vmatprep.subr.bf16.mxu0 0
        %592 = vmatpush1.bf16.msra.mxu0 %v570
        %593 = vmatprep.subr.bf16.mxu0 0
        %594 = vmatpush1.bf16.msra.mxu0 %v571
        %595 = vmatprep.subr.bf16.mxu0 0
        %596 = vmatpush1.bf16.msra.mxu0 %v572
        %597 = vmatprep.subr.bf16.mxu0 0
        %598 = vmatpush1.bf16.msra.mxu0 0
        %599 = vmatprep.subr.bf16.mxu0 0
        %600 = vmatpush1.bf16.msra.mxu0 0
        %601 = vmatprep.subr.bf16.mxu0 0
        %602 = vmatpush1.bf16.msra.mxu0 0
        %603 = vmatprep.subr.bf16.mxu0 0
        %604 = vmatpush1.bf16.msra.mxu0 0
        %605 = vmatprep.subr.bf16.mxu0 0
        %606 = vmatpush1.bf16.msra.mxu0 0
        %607 = vmatprep.subr.bf16.mxu0 0
        %608 = vmatpush1.bf16.msra.mxu0 0
        %609 = vmatprep.subr.bf16.mxu0 0
        %610 = vmatpush1.bf16.msra.mxu0 0
        %611 = vmatprep.subr.bf16.mxu0 0
        %612 = vmatpush1.bf16.msra.mxu0 0
        %613 = vmatprep.mubr.bf16.mxu0 0
        %614 = vmatmul.mubr.bf16.gmra.mrb[0].mxu0 %v517
        %v615 = vpop.f32.mrb[0].mxu0
        %v616 = vadd.f32 0.0, %v615
        %v617 = vpop.f32.mrb[0].mxu0
        %v618 = vpop.f32.mrb[0].mxu0
        %v619 = vadd.f32 0.0, %v618
        %v620 = vpop.f32.mrb[0].mxu0
        %621 = vmatprep.mubr.bf16.mxu0 0
        %622 = vmatmul.mubr.bf16.gmra.mrb[0].mxu0 %v518
        %v623 = vpop.f32.mrb[0].mxu0
        %v624 = vadd.f32 0.0, %v623
        %v625 = vpop.f32.mrb[0].mxu0
        %v626 = vpop.f32.mrb[0].mxu0
        %v627 = vadd.f32 0.0, %v626
        %v628 = vpop.f32.mrb[0].mxu0
        %629 = vmatprep.mubr.bf16.mxu0 0
        %630 = vmatmul.mubr.bf16.gmra.mrb[0].mxu0 %v519
        %v631 = vpop.f32.mrb[0].mxu0
        %v632 = vadd.f32 0.0, %v631
        %v633 = vpop.f32.mrb[0].mxu0
        %v634 = vpop.f32.mrb[0].mxu0
        %v635 = vadd.f32 0.0, %v634
        %v636 = vpop.f32.mrb[0].mxu0
        %637 = vmatprep.mubr.bf16.mxu0 0
        %638 = vmatmul.mubr.bf16.gmra.mrb[0].mxu0 %v520
        %v639 = vpop.f32.mrb[0].mxu0
        %v640 = vadd.f32 0.0, %v639
        %v641 = vpop.f32.mrb[0].mxu0
        %v642 = vpop.f32.mrb[0].mxu0
        %v643 = vadd.f32 0.0, %v642
        %v644 = vpop.f32.mrb[0].mxu0
        %645 = vmatprep.mubr.bf16.mxu0 0
        %646 = vmatmul.mubr.bf16.gmra.mrb[0].mxu0 %v521
        %v647 = vpop.f32.mrb[0].mxu0
        %v648 = vadd.f32 0.0, %v647
        %v649 = vpop.f32.mrb[0].mxu0
        %v650 = vpop.f32.mrb[0].mxu0
        %v651 = vadd.f32 0.0, %v650
        %v652 = vpop.f32.mrb[0].mxu0
        %653 = vmatprep.mubr.bf16.mxu0 0
        %654 = vmatmul.mubr.bf16.gmra.mrb[0].mxu0 %v522
        %v655 = vpop.f32.mrb[0].mxu0
        %v656 = vadd.f32 0.0, %v655
        %v657 = vpop.f32.mrb[0].mxu0
        %v658 = vpop.f32.mrb[0].mxu0
        %v659 = vadd.f32 0.0, %v658
        %v660 = vpop.f32.mrb[0].mxu0
        %661 = vmatprep.mubr.bf16.mxu0 0
        %662 = vmatmul.mubr.bf16.gmra.mrb[0].mxu0 %v523
        %v663 = vpop.f32.mrb[0].mxu0
        %v664 = vadd.f32 0.0, %v663
        %v665 = vpop.f32.mrb[0].mxu0
        %v666 = vpop.f32.mrb[0].mxu0
        %v667 = vadd.f32 0.0, %v666
        %v668 = vpop.f32.mrb[0].mxu0
        %669 = vmatprep.mubr.bf16.mxu0 0
        %670 = vmatmul.mubr.bf16.gmra.mrb[0].mxu0 %v524
        %v671 = vpop.f32.mrb[0].mxu0
        %v672 = vadd.f32 0.0, %v671
        %v673 = vpop.f32.mrb[0].mxu0
        %v674 = vpop.f32.mrb[0].mxu0
        %v675 = vadd.f32 0.0, %v674
        %v676 = vpop.f32.mrb[0].mxu0
        %677 = vdwg.mxu0
        %v678 = vadd.f32 %v437, %v616
        %v679 = vadd.f32 %v438, %v619
        %v680 = vadd.f32 %v439, %v624
        %v681 = vadd.f32 %v440, %v627
        %v682 = vadd.f32 %v441, %v632
        %v683 = vadd.f32 %v442, %v635
        %v684 = vadd.f32 %v443, %v640
        %v685 = vadd.f32 %v444, %v643
        %v686 = vadd.f32 %v445, %v648
        %v687 = vadd.f32 %v446, %v651
        %v688 = vadd.f32 %v447, %v656
        %v689 = vadd.f32 %v448, %v659
        %v690 = vadd.f32 %v449, %v664
        %v691 = vadd.f32 %v450, %v667
        %v692 = vadd.f32 %v451, %v672
        %v693 = vadd.f32 %v452, %v675
        %694 = vst [vmem:[#allocation2] sm:$0xff] %v678
        %695 = vst [vmem:[#allocation2 + $0x8] sm:$0xff] %v679
        %696 = vst [vmem:[#allocation2 + $0x10] sm:$0xff] %v680
        %697 = vst [vmem:[#allocation2 + $0x18] sm:$0xff] %v681
        %698 = vst [vmem:[#allocation2 + $0x20] sm:$0xff] %v682
        %699 = vst [vmem:[#allocation2 + $0x28] sm:$0xff] %v683
        %700 = vst [vmem:[#allocation2 + $0x30] sm:$0xff] %v684
        %701 = vst [vmem:[#allocation2 + $0x38] sm:$0xff] %v685
        %702 = vst [vmem:[#allocation2 + $0x40] sm:$0xff] %v686
        %703 = vst [vmem:[#allocation2 + $0x48] sm:$0xff] %v687
        %704 = vst [vmem:[#allocation2 + $0x50] sm:$0xff] %v688
        %705 = vst [vmem:[#allocation2 + $0x58] sm:$0xff] %v689
        %706 = vst [vmem:[#allocation2 + $0x60] sm:$0xff] %v690
        %707 = vst [vmem:[#allocation2 + $0x68] sm:$0xff] %v691
        %708 = vst [vmem:[#allocation2 + $0x70] sm:$0xff] %v692
        %709 = vst [vmem:[#allocation2 + $0x78] sm:$0xff] %v693
        %p710 = scmp.eq.s32.totalorder %s22, 1
        // Predicated region
        $region90: #{graphsage_link_predictor.2} parent=80 // pred_check
          %p711 = pneg %p710
        $region91: #{graphsage_link_predictor.2} parent=80 // pred_check_branch
          %713 = sbr.rel (%p711) target = $region93
        $region92: #{graphsage_link_predictor.2} parent=80 // pred_region
          %v714 = vld [vmem:[#allocation2] sm:$0xff]
          %v715 = vld [vmem:[#allocation2 + $0x8] sm:$0xff]
          %v716 = vld [vmem:[#allocation2 + $0x10] sm:$0xff]
          %v717 = vld [vmem:[#allocation2 + $0x18] sm:$0xff]
          %v718 = vld [vmem:[#allocation2 + $0x20] sm:$0xff]
          %v719 = vld [vmem:[#allocation2 + $0x28] sm:$0xff]
          %v720 = vld [vmem:[#allocation2 + $0x30] sm:$0xff]
          %v721 = vld [vmem:[#allocation2 + $0x38] sm:$0xff]
          %v722 = vld [vmem:[#allocation2 + $0x40] sm:$0xff]
          %v723 = vld [vmem:[#allocation2 + $0x48] sm:$0xff]
          %v724 = vld [vmem:[#allocation2 + $0x50] sm:$0xff]
          %v725 = vld [vmem:[#allocation2 + $0x58] sm:$0xff]
          %v726 = vld [vmem:[#allocation2 + $0x60] sm:$0xff]
          %v727 = vld [vmem:[#allocation2 + $0x68] sm:$0xff]
          %v728 = vld [vmem:[#allocation2 + $0x70] sm:$0xff]
          %v729 = vld [vmem:[#allocation2 + $0x78] sm:$0xff]
          %v730 = vld [vmem:[%s408] sm:$0xf]
          %v731 = vld [vmem:[%s408 + $0x4] sm:$0xf]
          %v732 = vld [vmem:[%s408 + $0x8] sm:$0xf]
          %v733 = vld [vmem:[%s408 + $0xc] sm:$0xf]
          %v734 = vld [vmem:[%s408 + $0x10] sm:$0xf]
          %v735 = vld [vmem:[%s408 + $0x14] sm:$0xf]
          %v736 = vld [vmem:[%s408 + $0x18] sm:$0xf]
          %v737 = vld [vmem:[%s408 + $0x1c] sm:$0xf]
          %v738 = vld [vmem:[%s408 + $0x20] sm:$0xf]
          %v739 = vld [vmem:[%s408 + $0x24] sm:$0xf]
          %v740 = vld [vmem:[%s408 + $0x28] sm:$0xf]
          %v741 = vld [vmem:[%s408 + $0x2c] sm:$0xf]
          %v742 = vld [vmem:[%s408 + $0x30] sm:$0xf]
          %v743 = vld [vmem:[%s408 + $0x34] sm:$0xf]
          %v744 = vld [vmem:[%s408 + $0x38] sm:$0xf]
          %v745 = vld [vmem:[%s408 + $0x3c] sm:$0xf]
          %v746 = vunpack.c.l.bf16 %v730
          %v747 = vunpack.c.l.bf16 %v731
          %v748 = vunpack.c.l.bf16 %v732
          %v749 = vunpack.c.l.bf16 %v733
          %v750 = vunpack.c.l.bf16 %v734
          %v751 = vunpack.c.l.bf16 %v735
          %v752 = vunpack.c.l.bf16 %v736
          %v753 = vunpack.c.l.bf16 %v737
          %v754 = vunpack.c.l.bf16 %v738
          %v755 = vunpack.c.l.bf16 %v739
          %v756 = vunpack.c.l.bf16 %v740
          %v757 = vunpack.c.l.bf16 %v741
          %v758 = vunpack.c.l.bf16 %v742
          %v759 = vunpack.c.l.bf16 %v743
          %v760 = vunpack.c.l.bf16 %v744
          %v761 = vunpack.c.l.bf16 %v745
          %v762 = vld [vmem:[%s3] sm:$0xff]
          %v763 = vld [vmem:[%s3 + $0x8] sm:$0xff]
          %v764 = vld [vmem:[%s3 + $0x10] sm:$0xff]
          %v765 = vld [vmem:[%s3 + $0x18] sm:$0xff]
          %v766 = vld [vmem:[%s3 + $0x20] sm:$0xff]
          %v767 = vld [vmem:[%s3 + $0x28] sm:$0xff]
          %v768 = vld [vmem:[%s3 + $0x30] sm:$0xff]
          %v769 = vld [vmem:[%s3 + $0x38] sm:$0xff]
          %v770 = vld [vmem:[%s3 + $0x40] sm:$0xff]
          %v771 = vld [vmem:[%s3 + $0x48] sm:$0xff]
          %v772 = vld [vmem:[%s3 + $0x50] sm:$0xff]
          %v773 = vld [vmem:[%s3 + $0x58] sm:$0xff]
          %v774 = vld [vmem:[%s3 + $0x60] sm:$0xff]
          %v775 = vld [vmem:[%s3 + $0x68] sm:$0xff]
          %v776 = vld [vmem:[%s3 + $0x70] sm:$0xff]
          %v777 = vld [vmem:[%s3 + $0x78] sm:$0xff]
          %v778 = vld [vmem:[%s4] sm:$0xff]
          %v779 = vld [vmem:[%s4 + $0x8] sm:$0xff]
          %v780 = vld [vmem:[%s4 + $0x10] sm:$0xff]
          %v781 = vld [vmem:[%s4 + $0x18] sm:$0xff]
          %v782 = vld [vmem:[%s4 + $0x20] sm:$0xff]
          %v783 = vld [vmem:[%s4 + $0x28] sm:$0xff]
          %v784 = vld [vmem:[%s4 + $0x30] sm:$0xff]
          %v785 = vld [vmem:[%s4 + $0x38] sm:$0xff]
          %v786 = vld [vmem:[%s4 + $0x40] sm:$0xff]
          %v787 = vld [vmem:[%s4 + $0x48] sm:$0xff]
          %v788 = vld [vmem:[%s4 + $0x50] sm:$0xff]
          %v789 = vld [vmem:[%s4 + $0x58] sm:$0xff]
          %v790 = vld [vmem:[%s4 + $0x60] sm:$0xff]
          %v791 = vld [vmem:[%s4 + $0x68] sm:$0xff]
          %v792 = vld [vmem:[%s4 + $0x70] sm:$0xff]
          %v793 = vld [vmem:[%s4 + $0x78] sm:$0xff]
          %794 = vmatprep.subr.mxu0 0.0
          %795 = vmatpush1.msra.mxu0 %v778
          %796 = vmatprep.subr.mxu0 0.0
          %797 = vmatpush1.msra.mxu0 %v779
          %798 = vmatprep.subr.mxu0 0.0
          %799 = vmatpush1.msra.mxu0 %v780
          %800 = vmatprep.subr.mxu0 0.0
          %801 = vmatpush1.msra.mxu0 %v781
          %802 = vmatprep.subr.mxu0 0.0
          %803 = vmatpush1.msra.mxu0 %v782
          %804 = vmatprep.subr.mxu0 0.0
          %805 = vmatpush1.msra.mxu0 %v783
          %806 = vmatprep.subr.mxu0 0.0
          %807 = vmatpush1.msra.mxu0 %v784
          %808 = vmatprep.subr.mxu0 0.0
          %809 = vmatpush1.msra.mxu0 %v785
          %810 = vmatprep.subr.mxu0 0.0
          %811 = vmatpush1.msra.mxu0 %v786
          %812 = vmatprep.subr.mxu0 0.0
          %813 = vmatpush1.msra.mxu0 %v787
          %814 = vmatprep.subr.mxu0 0.0
          %815 = vmatpush1.msra.mxu0 %v788
          %816 = vmatprep.subr.mxu0 0.0
          %817 = vmatpush1.msra.mxu0 %v789
          %818 = vmatprep.subr.mxu0 0.0
          %819 = vmatpush1.msra.mxu0 %v790
          %820 = vmatprep.subr.mxu0 0.0
          %821 = vmatpush1.msra.mxu0 %v791
          %822 = vmatprep.subr.mxu0 0.0
          %823 = vmatpush1.msra.mxu0 %v792
          %824 = vmatprep.subr.mxu0 0.0
          %825 = vmatpush1.msra.mxu0 %v793
          %826 = vmatprep.subr.mxu0 0.0
          %827 = vmatpush1.msra.mxu0 0.0
          %828 = vmatprep.subr.mxu0 0.0
          %829 = vmatpush1.msra.mxu0 0.0
          %830 = vmatprep.subr.mxu0 0.0
          %831 = vmatpush1.msra.mxu0 0.0
          %832 = vmatprep.subr.mxu0 0.0
          %833 = vmatpush1.msra.mxu0 0.0
          %834 = vmatprep.subr.mxu0 0.0
          %835 = vmatpush1.msra.mxu0 0.0
          %836 = vmatprep.subr.mxu0 0.0
          %837 = vmatpush1.msra.mxu0 0.0
          %838 = vmatprep.subr.mxu0 0.0
          %839 = vmatpush1.msra.mxu0 0.0
          %840 = vmatprep.subr.mxu0 0.0
          %841 = vmatpush1.msra.mxu0 0.0
          %842 = vmatprep.subr.mxu0 0.0
          %843 = vmatpush1.msra.mxu0 0.0
          %844 = vmatprep.subr.mxu0 0.0
          %845 = vmatpush1.msra.mxu0 0.0
          %846 = vmatprep.subr.mxu0 0.0
          %847 = vmatpush1.msra.mxu0 0.0
          %848 = vmatprep.subr.mxu0 0.0
          %849 = vmatpush1.msra.mxu0 0.0
          %850 = vmatprep.subr.mxu0 0.0
          %851 = vmatpush1.msra.mxu0 0.0
          %852 = vmatprep.subr.mxu0 0.0
          %853 = vmatpush1.msra.mxu0 0.0
          %854 = vmatprep.subr.mxu0 0.0
          %855 = vmatpush1.msra.mxu0 0.0
          %856 = vmatprep.subr.mxu0 0.0
          %857 = vmatpush1.msra.mxu0 0.0
          %858 = vmatprep.mubr.f32.mxu0 0.0
          %859 = vmatmul.mubr.f32.gmra.mrb[0].mxu0 %v746
          %v860 = vpop.f32.mrb[0].mxu0
          %v861 = vadd.f32 0.0, %v860
          %v862 = vpop.f32.mrb[0].mxu0
          %863 = vmatprep.mubr.f32.mxu0 0.0
          %864 = vmatmul.mubr.f32.gmra.mrb[0].mxu0 %v747
          %v865 = vpop.f32.mrb[0].mxu0
          %v866 = vadd.f32 0.0, %v865
          %v867 = vpop.f32.mrb[0].mxu0
          %868 = vmatprep.mubr.f32.mxu0 0.0
          %869 = vmatmul.mubr.f32.gmra.mrb[0].mxu0 %v748
          %v870 = vpop.f32.mrb[0].mxu0
          %v871 = vadd.f32 0.0, %v870
          %v872 = vpop.f32.mrb[0].mxu0
          %873 = vmatprep.mubr.f32.mxu0 0.0
          %874 = vmatmul.mubr.f32.gmra.mrb[0].mxu0 %v749
          %v875 = vpop.f32.mrb[0].mxu0
          %v876 = vadd.f32 0.0, %v875
          %v877 = vpop.f32.mrb[0].mxu0
          %878 = vmatprep.mubr.f32.mxu0 0.0
          %879 = vmatmul.mubr.f32.gmra.mrb[0].mxu0 %v750
          %v880 = vpop.f32.mrb[0].mxu0
          %v881 = vadd.f32 0.0, %v880
          %v882 = vpop.f32.mrb[0].mxu0
          %883 = vmatprep.mubr.f32.mxu0 0.0
          %884 = vmatmul.mubr.f32.gmra.mrb[0].mxu0 %v751
          %v885 = vpop.f32.mrb[0].mxu0
          %v886 = vadd.f32 0.0, %v885
          %v887 = vpop.f32.mrb[0].mxu0
          %888 = vmatprep.mubr.f32.mxu0 0.0
          %889 = vmatmul.mubr.f32.gmra.mrb[0].mxu0 %v752
          %v890 = vpop.f32.mrb[0].mxu0
          %v891 = vadd.f32 0.0, %v890
          %v892 = vpop.f32.mrb[0].mxu0
          %893 = vmatprep.mubr.f32.mxu0 0.0
          %894 = vmatmul.mubr.f32.gmra.mrb[0].mxu0 %v753
          %v895 = vpop.f32.mrb[0].mxu0
          %v896 = vadd.f32 0.0, %v895
          %v897 = vpop.f32.mrb[0].mxu0
          %898 = vmatprep.mubr.f32.mxu0 0.0
          %899 = vmatmul.mubr.f32.gmra.mrb[0].mxu0 %v754
          %v900 = vpop.f32.mrb[0].mxu0
          %v901 = vadd.f32 0.0, %v900
          %v902 = vpop.f32.mrb[0].mxu0
          %903 = vmatprep.mubr.f32.mxu0 0.0
          %904 = vmatmul.mubr.f32.gmra.mrb[0].mxu0 %v755
          %v905 = vpop.f32.mrb[0].mxu0
          %v906 = vadd.f32 0.0, %v905
          %v907 = vpop.f32.mrb[0].mxu0
          %908 = vmatprep.mubr.f32.mxu0 0.0
          %909 = vmatmul.mubr.f32.gmra.mrb[0].mxu0 %v756
          %v910 = vpop.f32.mrb[0].mxu0
          %v911 = vadd.f32 0.0, %v910
          %v912 = vpop.f32.mrb[0].mxu0
          %913 = vmatprep.mubr.f32.mxu0 0.0
          %914 = vmatmul.mubr.f32.gmra.mrb[0].mxu0 %v757
          %v915 = vpop.f32.mrb[0].mxu0
          %v916 = vadd.f32 0.0, %v915
          %v917 = vpop.f32.mrb[0].mxu0
          %918 = vmatprep.mubr.f32.mxu0 0.0
          %919 = vmatmul.mubr.f32.gmra.mrb[0].mxu0 %v758
          %v920 = vpop.f32.mrb[0].mxu0
          %v921 = vadd.f32 0.0, %v920
          %v922 = vpop.f32.mrb[0].mxu0
          %923 = vmatprep.mubr.f32.mxu0 0.0
          %924 = vmatmul.mubr.f32.gmra.mrb[0].mxu0 %v759
          %v925 = vpop.f32.mrb[0].mxu0
          %v926 = vadd.f32 0.0, %v925
          %v927 = vpop.f32.mrb[0].mxu0
          %928 = vmatprep.mubr.f32.mxu0 0.0
          %929 = vmatmul.mubr.f32.gmra.mrb[0].mxu0 %v760
          %v930 = vpop.f32.mrb[0].mxu0
          %v931 = vadd.f32 0.0, %v930
          %v932 = vpop.f32.mrb[0].mxu0
          %933 = vmatprep.mubr.f32.mxu0 0.0
          %934 = vmatmul.mubr.f32.gmra.mrb[0].mxu0 %v761
          %v935 = vpop.f32.mrb[0].mxu0
          %v936 = vadd.f32 0.0, %v935
          %v937 = vpop.f32.mrb[0].mxu0
          %938 = vdwg.mxu0
          %939 = vmatprep.subr.mxu0 0.0
          %940 = vmatpush1.msra.mxu0 %v762
          %941 = vmatprep.subr.mxu0 0.0
          %942 = vmatpush1.msra.mxu0 %v763
          %943 = vmatprep.subr.mxu0 0.0
          %944 = vmatpush1.msra.mxu0 %v764
          %945 = vmatprep.subr.mxu0 0.0
          %946 = vmatpush1.msra.mxu0 %v765
          %947 = vmatprep.subr.mxu0 0.0
          %948 = vmatpush1.msra.mxu0 %v766
          %949 = vmatprep.subr.mxu0 0.0
          %950 = vmatpush1.msra.mxu0 %v767
          %951 = vmatprep.subr.mxu0 0.0
          %952 = vmatpush1.msra.mxu0 %v768
          %953 = vmatprep.subr.mxu0 0.0
          %954 = vmatpush1.msra.mxu0 %v769
          %955 = vmatprep.subr.mxu0 0.0
          %956 = vmatpush1.msra.mxu0 %v770
          %957 = vmatprep.subr.mxu0 0.0
          %958 = vmatpush1.msra.mxu0 %v771
          %959 = vmatprep.subr.mxu0 0.0
          %960 = vmatpush1.msra.mxu0 %v772
          %961 = vmatprep.subr.mxu0 0.0
          %962 = vmatpush1.msra.mxu0 %v773
          %963 = vmatprep.subr.mxu0 0.0
          %964 = vmatpush1.msra.mxu0 %v774
          %965 = vmatprep.subr.mxu0 0.0
          %966 = vmatpush1.msra.mxu0 %v775
          %967 = vmatprep.subr.mxu0 0.0
          %968 = vmatpush1.msra.mxu0 %v776
          %969 = vmatprep.subr.mxu0 0.0
          %970 = vmatpush1.msra.mxu0 %v777
          %971 = vmatprep.subr.mxu0 0.0
          %972 = vmatpush1.msra.mxu0 0.0
          %973 = vmatprep.subr.mxu0 0.0
          %974 = vmatpush1.msra.mxu0 0.0
          %975 = vmatprep.subr.mxu0 0.0
          %976 = vmatpush1.msra.mxu0 0.0
          %977 = vmatprep.subr.mxu0 0.0
          %978 = vmatpush1.msra.mxu0 0.0
          %979 = vmatprep.subr.mxu0 0.0
          %980 = vmatpush1.msra.mxu0 0.0
          %981 = vmatprep.subr.mxu0 0.0
          %982 = vmatpush1.msra.mxu0 0.0
          %983 = vmatprep.subr.mxu0 0.0
          %984 = vmatpush1.msra.mxu0 0.0
          %985 = vmatprep.subr.mxu0 0.0
          %986 = vmatpush1.msra.mxu0 0.0
          %987 = vmatprep.subr.mxu0 0.0
          %988 = vmatpush1.msra.mxu0 0.0
          %989 = vmatprep.subr.mxu0 0.0
          %990 = vmatpush1.msra.mxu0 0.0
          %991 = vmatprep.subr.mxu0 0.0
          %992 = vmatpush1.msra.mxu0 0.0
          %993 = vmatprep.subr.mxu0 0.0
          %994 = vmatpush1.msra.mxu0 0.0
          %995 = vmatprep.subr.mxu0 0.0
          %996 = vmatpush1.msra.mxu0 0.0
          %997 = vmatprep.subr.mxu0 0.0
          %998 = vmatpush1.msra.mxu0 0.0
          %999 = vmatprep.subr.mxu0 0.0
          %1000 = vmatpush1.msra.mxu0 0.0
          %1001 = vmatprep.subr.mxu0 0.0
          %1002 = vmatpush1.msra.mxu0 0.0
          %1003 = vmatprep.mubr.f32.mxu0 0.0
          %1004 = vmatmul.mubr.f32.gmra.mrb[0].mxu0 %v714
          %v1005 = vpop.f32.mrb[0].mxu0
          %v1006 = vadd.f32 %v861, %v1005
          %v1007 = vpop.f32.mrb[0].mxu0
          %1008 = vmatprep.mubr.f32.mxu0 0.0
          %1009 = vmatmul.mubr.f32.gmra.mrb[0].mxu0 %v715
          %v1010 = vpop.f32.mrb[0].mxu0
          %v1011 = vadd.f32 %v866, %v1010
          %v1012 = vpop.f32.mrb[0].mxu0
          %1013 = vmatprep.mubr.f32.mxu0 0.0
          %1014 = vmatmul.mubr.f32.gmra.mrb[0].mxu0 %v716
          %v1015 = vpop.f32.mrb[0].mxu0
          %v1016 = vadd.f32 %v871, %v1015
          %v1017 = vpop.f32.mrb[0].mxu0
          %1018 = vmatprep.mubr.f32.mxu0 0.0
          %1019 = vmatmul.mubr.f32.gmra.mrb[0].mxu0 %v717
          %v1020 = vpop.f32.mrb[0].mxu0
          %v1021 = vadd.f32 %v876, %v1020
          %v1022 = vpop.f32.mrb[0].mxu0
          %1023 = vmatprep.mubr.f32.mxu0 0.0
          %1024 = vmatmul.mubr.f32.gmra.mrb[0].mxu0 %v718
          %v1025 = vpop.f32.mrb[0].mxu0
          %v1026 = vadd.f32 %v881, %v1025
          %v1027 = vpop.f32.mrb[0].mxu0
          %1028 = vmatprep.mubr.f32.mxu0 0.0
          %1029 = vmatmul.mubr.f32.gmra.mrb[0].mxu0 %v719
          %v1030 = vpop.f32.mrb[0].mxu0
          %v1031 = vadd.f32 %v886, %v1030
          %v1032 = vpop.f32.mrb[0].mxu0
          %1033 = vmatprep.mubr.f32.mxu0 0.0
          %1034 = vmatmul.mubr.f32.gmra.mrb[0].mxu0 %v720
          %v1035 = vpop.f32.mrb[0].mxu0
          %v1036 = vadd.f32 %v891, %v1035
          %v1037 = vpop.f32.mrb[0].mxu0
          %1038 = vmatprep.mubr.f32.mxu0 0.0
          %1039 = vmatmul.mubr.f32.gmra.mrb[0].mxu0 %v721
          %v1040 = vpop.f32.mrb[0].mxu0
          %v1041 = vadd.f32 %v896, %v1040
          %v1042 = vpop.f32.mrb[0].mxu0
          %1043 = vmatprep.mubr.f32.mxu0 0.0
          %1044 = vmatmul.mubr.f32.gmra.mrb[0].mxu0 %v722
          %v1045 = vpop.f32.mrb[0].mxu0
          %v1046 = vadd.f32 %v901, %v1045
          %v1047 = vpop.f32.mrb[0].mxu0
          %1048 = vmatprep.mubr.f32.mxu0 0.0
          %1049 = vmatmul.mubr.f32.gmra.mrb[0].mxu0 %v723
          %v1050 = vpop.f32.mrb[0].mxu0
          %v1051 = vadd.f32 %v906, %v1050
          %v1052 = vpop.f32.mrb[0].mxu0
          %1053 = vmatprep.mubr.f32.mxu0 0.0
          %1054 = vmatmul.mubr.f32.gmra.mrb[0].mxu0 %v724
          %v1055 = vpop.f32.mrb[0].mxu0
          %v1056 = vadd.f32 %v911, %v1055
          %v1057 = vpop.f32.mrb[0].mxu0
          %1058 = vmatprep.mubr.f32.mxu0 0.0
          %1059 = vmatmul.mubr.f32.gmra.mrb[0].mxu0 %v725
          %v1060 = vpop.f32.mrb[0].mxu0
          %v1061 = vadd.f32 %v916, %v1060
          %v1062 = vpop.f32.mrb[0].mxu0
          %1063 = vmatprep.mubr.f32.mxu0 0.0
          %1064 = vmatmul.mubr.f32.gmra.mrb[0].mxu0 %v726
          %v1065 = vpop.f32.mrb[0].mxu0
          %v1066 = vadd.f32 %v921, %v1065
          %v1067 = vpop.f32.mrb[0].mxu0
          %1068 = vmatprep.mubr.f32.mxu0 0.0
          %1069 = vmatmul.mubr.f32.gmra.mrb[0].mxu0 %v727
          %v1070 = vpop.f32.mrb[0].mxu0
          %v1071 = vadd.f32 %v926, %v1070
          %v1072 = vpop.f32.mrb[0].mxu0
          %1073 = vmatprep.mubr.f32.mxu0 0.0
          %1074 = vmatmul.mubr.f32.gmra.mrb[0].mxu0 %v728
          %v1075 = vpop.f32.mrb[0].mxu0
          %v1076 = vadd.f32 %v931, %v1075
          %v1077 = vpop.f32.mrb[0].mxu0
          %1078 = vmatprep.mubr.f32.mxu0 0.0
          %1079 = vmatmul.mubr.f32.gmra.mrb[0].mxu0 %v729
          %v1080 = vpop.f32.mrb[0].mxu0
          %v1081 = vadd.f32 %v936, %v1080
          %v1082 = vpop.f32.mrb[0].mxu0
          %1083 = vdwg.mxu0
          %v1084 = vld [vmem:[%s5] sm:$0x1]
          %v1086 = vlaneseq
          %v1087 = vshrl.u32 %v1086, 7
          %v1088 = vsub.s32 0, %v1087
          %v1089 = vrot.slane %v1084, %v1088
          %v1091 = vadd.f32 %v1006, %v1089
          %v1092 = vadd.f32 %v1011, %v1089
          %v1093 = vadd.f32 %v1016, %v1089
          %v1094 = vadd.f32 %v1021, %v1089
          %v1095 = vadd.f32 %v1026, %v1089
          %v1096 = vadd.f32 %v1031, %v1089
          %v1097 = vadd.f32 %v1036, %v1089
          %v1098 = vadd.f32 %v1041, %v1089
          %v1099 = vadd.f32 %v1046, %v1089
          %v1100 = vadd.f32 %v1051, %v1089
          %v1101 = vadd.f32 %v1056, %v1089
          %v1102 = vadd.f32 %v1061, %v1089
          %v1103 = vadd.f32 %v1066, %v1089
          %v1104 = vadd.f32 %v1071, %v1089
          %v1105 = vadd.f32 %v1076, %v1089
          %v1106 = vadd.f32 %v1081, %v1089
          %v1107 = vmax.f32 %v1091, 0.0
          %v1108 = vmax.f32 %v1092, 0.0
          %v1109 = vmax.f32 %v1093, 0.0
          %v1110 = vmax.f32 %v1094, 0.0
          %v1111 = vmax.f32 %v1095, 0.0
          %v1112 = vmax.f32 %v1096, 0.0
          %v1113 = vmax.f32 %v1097, 0.0
          %v1114 = vmax.f32 %v1098, 0.0
          %v1115 = vmax.f32 %v1099, 0.0
          %v1116 = vmax.f32 %v1100, 0.0
          %v1117 = vmax.f32 %v1101, 0.0
          %v1118 = vmax.f32 %v1102, 0.0
          %v1119 = vmax.f32 %v1103, 0.0
          %v1120 = vmax.f32 %v1104, 0.0
          %v1121 = vmax.f32 %v1105, 0.0
          %v1122 = vmax.f32 %v1106, 0.0
          %v1123 = vpack.c.bf16 %v1108, %v1107
          %v1124 = vpack.c.bf16 %v1110, %v1109
          %v1125 = vpack.c.bf16 %v1112, %v1111
          %v1126 = vpack.c.bf16 %v1114, %v1113
          %v1127 = vpack.c.bf16 %v1116, %v1115
          %v1128 = vpack.c.bf16 %v1118, %v1117
          %v1129 = vpack.c.bf16 %v1120, %v1119
          %v1130 = vpack.c.bf16 %v1122, %v1121
          %v1139 = vunpack.c.l.b16 %v1123
          %v1140 = vunpack.c.h.b16 %v1123
          %v1141 = vunpack.c.l.b16 %v1124
          %v1142 = vunpack.c.h.b16 %v1124
          %v1143 = vunpack.c.l.b16 %v1125
          %v1144 = vunpack.c.h.b16 %v1125
          %v1145 = vunpack.c.l.b16 %v1126
          %v1146 = vunpack.c.h.b16 %v1126
          %v1147 = vunpack.c.l.b16 %v1127
          %v1148 = vunpack.c.h.b16 %v1127
          %v1149 = vunpack.c.l.b16 %v1128
          %v1150 = vunpack.c.h.b16 %v1128
          %v1151 = vunpack.c.l.b16 %v1129
          %v1152 = vunpack.c.h.b16 %v1129
          %v1153 = vunpack.c.l.b16 %v1130
          %v1154 = vunpack.c.h.b16 %v1130
          %v1155 = vpack.c.b16 %v1139, %v1139
          %v1156 = vpack.c.b16 %v1140, %v1140
          %v1157 = vpack.c.b16 %v1141, %v1141
          %v1158 = vpack.c.b16 %v1142, %v1142
          %v1159 = vpack.c.b16 %v1143, %v1143
          %v1160 = vpack.c.b16 %v1144, %v1144
          %v1161 = vpack.c.b16 %v1145, %v1145
          %v1162 = vpack.c.b16 %v1146, %v1146
          %v1163 = vpack.c.b16 %v1147, %v1147
          %v1164 = vpack.c.b16 %v1148, %v1148
          %v1165 = vpack.c.b16 %v1149, %v1149
          %v1166 = vpack.c.b16 %v1150, %v1150
          %v1167 = vpack.c.b16 %v1151, %v1151
          %v1168 = vpack.c.b16 %v1152, %v1152
          %v1169 = vpack.c.b16 %v1153, %v1153
          %v1170 = vpack.c.b16 %v1154, %v1154
          %1187 = vst [vmem:[%s414] sm:$0xf] %v1155
          %1188 = vst [vmem:[%s414 + $0x4] sm:$0xf] %v1156
          %1189 = vst [vmem:[%s414 + $0x8] sm:$0xf] %v1157
          %1190 = vst [vmem:[%s414 + $0xc] sm:$0xf] %v1158
          %1191 = vst [vmem:[%s414 + $0x10] sm:$0xf] %v1159
          %1192 = vst [vmem:[%s414 + $0x14] sm:$0xf] %v1160
          %1193 = vst [vmem:[%s414 + $0x18] sm:$0xf] %v1161
          %1194 = vst [vmem:[%s414 + $0x1c] sm:$0xf] %v1162
          %1195 = vst [vmem:[%s414 + $0x20] sm:$0xf] %v1163
          %1196 = vst [vmem:[%s414 + $0x24] sm:$0xf] %v1164
          %1197 = vst [vmem:[%s414 + $0x28] sm:$0xf] %v1165
          %1198 = vst [vmem:[%s414 + $0x2c] sm:$0xf] %v1166
          %1199 = vst [vmem:[%s414 + $0x30] sm:$0xf] %v1167
          %1200 = vst [vmem:[%s414 + $0x34] sm:$0xf] %v1168
          %1201 = vst [vmem:[%s414 + $0x38] sm:$0xf] %v1169
          %1202 = vst [vmem:[%s414 + $0x3c] sm:$0xf] %v1170
        $region93: #{graphsage_link_predictor.2} parent=80 // pred_fallthru
          _
        %s1203 = smul.u32 16, %s21
        %p1204 = scmp.lt.s32.totalorder %s1203, 31
        %s1205 = scalar_select %p1204, %s1203, 31
        %s1206 = smul.addr %s1205, 4
        %s1207 = scalar_lea.vmem %s6, %s1206
        // Predicated region
        $region94: #{graphsage_link_predictor.2} parent=80 // pred_check
          %p1208 = pneg %p190
        $region95: #{graphsage_link_predictor.2} parent=80 // pred_check_branch
          %1210 = sbr.rel (%p1208) target = $region97
        $region96: #{graphsage_link_predictor.2} parent=80 // pred_region
          %s1211 = smul.u32 16, %s21
        $region97: #{graphsage_link_predictor.2} parent=80 // pred_fallthru
          _
      $region81: #{graphsage_link_predictor.2} parent=5 // pred_fallthru
        _
      %p1212 = scmp.le.s32.totalorder 2, %s12
      // Predicated region
      $region98: #{graphsage_link_predictor.2} parent=5 // pred_check
        %p1213 = pneg %p1212
      $region99: #{graphsage_link_predictor.2} parent=5 // pred_check_branch
        %1215 = sbr.rel (%p1213) target = $region101
      $region100: #{graphsage_link_predictor.2} parent=5 // pred_region
        %s1216 = ssub.s32 %s12, 2
        // Predicated region
        $region102: #{graphsage_link_predictor.2} parent=100 // pred_check
          %p1217 = pneg %p196
        $region103: #{graphsage_link_predictor.2} parent=100 // pred_check_branch
          %1219 = sbr.rel (%p1217) target = $region105
        $region104: #{graphsage_link_predictor.2} parent=100 // pred_region
          %s1220 = smul.u32 16, %s23
          %p1221 = scmp.lt.s32.totalorder %s1220, 31
          %s1222 = scalar_select %p1221, %s1220, 31
          %s1223 = smul.addr %s1222, 4
          %s1224 = scalar_lea.vmem %s6, %s1223
        $region105: #{graphsage_link_predictor.2} parent=100 // pred_fallthru
          _
      $region101: #{graphsage_link_predictor.2} parent=5 // pred_fallthru
        _
    $region6: #{graphsage_link_predictor.2} parent=1 // loop_footer
      %s16 = sadd.s32 1, %s12
    $region7: #{graphsage_link_predictor.2} parent=1 // loop_footer_branch
      %11 = sbr.rel target = $region3
    $region8: #{graphsage_link_predictor.2} parent=1 // loop_exit
      _

</llo_original>
